<compile_context>
chip_gen: v7x
topology: tpu7x:2x2x1
jax: 0.10.0
libtpu: 0.0.40
codegen_flags: <defaults>
</compile_context>

<pallas_src>
import functools
import math

import jax
import jax.numpy as jnp
from jax import lax
from jax.experimental import pallas as pl
from jax.experimental.pallas import tpu as pltpu


def _cross_modal_attn_kernel(
    q_ref, k_ref, v_ref,              # (bb, S, D) blocks
    wq_ref, wk_ref, wv_ref,           # (D, D)  pre-transposed: x @ W^T
    bq_ref, bk_ref, bv_ref,           # (1, D)
    wo_ref, bo_ref,                   # (D, D) pre-transposed, (1, D)
    gamma_ref, beta_ref,              # (1, D)
    out_ref,                          # (bb, S, D)
    *, n_heads: int,
):
    bb, S, D = q_ref.shape
    hd = D // n_heads
    scale = 1.0 / math.sqrt(hd)

    # Flatten (bb, S, D) -> (bb*S, D): one tall projection matmul per weight.
    q_f32 = q_ref[...].reshape(bb * S, D)                 # kept f32 for residual
    q_bf = q_f32.astype(jnp.bfloat16)
    k_bf = k_ref[...].reshape(bb * S, D).astype(jnp.bfloat16)
    v_bf = v_ref[...].reshape(bb * S, D).astype(jnp.bfloat16)

    wq = wq_ref[...].astype(jnp.bfloat16)
    wk = wk_ref[...].astype(jnp.bfloat16)
    wv = wv_ref[...].astype(jnp.bfloat16)
    wo = wo_ref[...].astype(jnp.bfloat16)

    # --- input projections (Linear: x @ W^T + b), f32 accumulation ----------
    qp = jnp.dot(q_bf, wq, preferred_element_type=jnp.float32) + bq_ref[...]
    kp = jnp.dot(k_bf, wk, preferred_element_type=jnp.float32) + bk_ref[...]
    vp = jnp.dot(v_bf, wv, preferred_element_type=jnp.float32) + bv_ref[...]

    # --- per-head attention with the output projection folded in ------------
    # attn_out accumulates ctx_h @ wo_rows_h -> avoids concatenating (S, hd)
    # pieces along the lane axis.
    attn_out = jnp.zeros((bb * S, D), jnp.float32)
    for h in range(n_heads):  # static & small; use lax.fori_loop if H grows
        sl = slice(h * hd, (h + 1) * hd)
        qh = qp[:, sl].reshape(bb, S, hd).astype(jnp.bfloat16)
        kh = kp[:, sl].reshape(bb, S, hd).astype(jnp.bfloat16)
        vh = vp[:, sl].reshape(bb, S, hd).astype(jnp.bfloat16)

        # scores: batched contraction on last dims (no explicit kh transpose)
        scores = lax.dot_general(
            qh, kh, (((2,), (2,)), ((0,), (0,))),
            preferred_element_type=jnp.float32) * scale           # (bb, S, S)

        # numerically-stable softmax over keys
        m = jnp.max(scores, axis=-1, keepdims=True)
        e = jnp.exp(scores - m)
        p = e * pl.reciprocal(jnp.sum(e, axis=-1, keepdims=True), approx=True)

        ctx = lax.dot_general(
            p.astype(jnp.bfloat16), vh, (((2,), (1,)), ((0,), (0,))),
            preferred_element_type=jnp.float32)                   # (bb, S, hd)

        attn_out = attn_out + jnp.dot(
            ctx.reshape(bb * S, hd).astype(jnp.bfloat16), wo[sl, :],
            preferred_element_type=jnp.float32)

    attn_out = attn_out + bo_ref[...]

    # --- dropout (identity in eval) + residual + LayerNorm (f32) -------------
    resid = q_f32 + attn_out
    mean = jnp.mean(resid, axis=-1, keepdims=True)
    centered = resid - mean
    var = jnp.mean(centered * centered, axis=-1, keepdims=True)
    norm = centered * lax.rsqrt(var + 1e-5)
    out = norm * gamma_ref[...] + beta_ref[...]
    out_ref[...] = out.reshape(bb, S, D).astype(out_ref.dtype)


def cross_modal_attention(query, key, value, params, n_heads, *, batch_block=None):
    """query/key/value: (B, S, D) float32.  params: dict of weights."""
    B, S, D = query.shape
    if batch_block is None:
        # Tiny problem: take the whole batch per grid step so projections are
        # one (B*S, D) matmul.  For larger B (and for v7x 2-TC sharding) pass
        # a smaller batch_block and the batch grid axis is marked "parallel".
        batch_block = B
    assert B % batch_block == 0, "batch must be divisible by batch_block"

    # pre-transpose Linear weights so kernel does x @ W_T
    wq_t = params["wq"].T
    wk_t = params["wk"].T
    wv_t = params["wv"].T
    wo_t = params["wo"].T
    bq = params["bq"].reshape(1, D)
    bk = params["bk"].reshape(1, D)
    bv = params["bv"].reshape(1, D)
    bo = params["bo"].reshape(1, D)
    gamma = params["ln_gamma"].reshape(1, D)
    beta = params["ln_beta"].reshape(1, D)

    seq_spec = pl.BlockSpec((batch_block, S, D), lambda b: (b, 0, 0))
    # NOTE: at production D, single-buffer these constant-index weights
    # (pipeline_mode=pl.Buffered(1)) and set vmem_limit_bytes for v7x (64 MiB).
    mat_spec = pl.BlockSpec((D, D), lambda b: (0, 0))
    vec_spec = pl.BlockSpec((1, D), lambda b: (0, 0))

    kernel = functools.partial(_cross_modal_attn_kernel, n_heads=n_heads)

    return pl.pallas_call(
        kernel,
        out_shape=jax.ShapeDtypeStruct((B, S, D), jnp.float32),
        grid_spec=pltpu.PrefetchScalarGridSpec(
            num_scalar_prefetch=0,
            grid=(B // batch_block,),
            in_specs=[
                seq_spec, seq_spec, seq_spec,          # q, k, v
                mat_spec, mat_spec, mat_spec,          # wq_t, wk_t, wv_t
                vec_spec, vec_spec, vec_spec,          # bq, bk, bv
                mat_spec, vec_spec,                    # wo_t, bo
                vec_spec, vec_spec,                    # gamma, beta
            ],
            out_specs=seq_spec,
        ),
        compiler_params=pltpu.CompilerParams(
            dimension_semantics=("parallel",),
        ),
    )(query, key, value, wq_t, wk_t, wv_t, bq, bk, bv, wo_t, bo, gamma, beta)


def _reference(query, key, value, params, n_heads):
    """Pure-JAX f32 reference mirroring nn.MultiheadAttention (eval) + LN."""
    B, S, D = query.shape
    hd = D // n_heads
    qp = query @ params["wq"].T + params["bq"]
    kp = key @ params["wk"].T + params["bk"]
    vp = value @ params["wv"].T + params["bv"]

    def split(x):  # (B,S,D) -> (B,H,S,hd)
        return x.reshape(B, S, n_heads, hd).transpose(0, 2, 1, 3)

    qh, kh, vh = split(qp), split(kp), split(vp)
    scores = jnp.einsum("bhqd,bhkd->bhqk", qh, kh) / math.sqrt(hd)
    p = jax.nn.softmax(scores, axis=-1)
    ctx = jnp.einsum("bhqk,bhkd->bhqd", p, vh)
    ctx = ctx.transpose(0, 2, 1, 3).reshape(B, S, D)
    attn_out = ctx @ params["wo"].T + params["bo"]
    resid = query + attn_out
    mean = resid.mean(-1, keepdims=True)
    var = ((resid - mean) ** 2).mean(-1, keepdims=True)
    norm = (resid - mean) / jnp.sqrt(var + 1e-5)
    return norm * params["ln_gamma"] + params["ln_beta"]


def _init_params(key, d_model):
    # Deterministic synthetic init (xavier-ish scale); not a checkpoint load.
    ks = jax.random.split(key, 8)
    s = 1.0 / math.sqrt(d_model)
    return {
        "wq": jax.random.uniform(ks[0], (d_model, d_model), jnp.float32, -s, s),
        "wk": jax.random.uniform(ks[1], (d_model, d_model), jnp.float32, -s, s),
        "wv": jax.random.uniform(ks[2], (d_model, d_model), jnp.float32, -s, s),
        "wo": jax.random.uniform(ks[3], (d_model, d_model), jnp.float32, -s, s),
        "bq": jax.random.uniform(ks[4], (d_model,), jnp.float32, -s, s),
        "bk": jax.random.uniform(ks[5], (d_model,), jnp.float32, -s, s),
        "bv": jax.random.uniform(ks[6], (d_model,), jnp.float32, -s, s),
        "bo": jax.random.uniform(ks[7], (d_model,), jnp.float32, -s, s),
        "ln_gamma": jnp.ones((d_model,), jnp.float32),
        "ln_beta": jnp.zeros((d_model,), jnp.float32),
    }


if __name__ == "__main__":
    B, S, D, H = 2, 8, 32, 4   # batch, seq_len, d_model, n_heads

    root = jax.random.PRNGKey(0)
    kq, kk, kv, kp = jax.random.split(root, 4)
    query = jax.random.normal(kq, (B, S, D), jnp.float32)
    key_t = jax.random.normal(kk, (B, S, D), jnp.float32)
    value = jax.random.normal(kv, (B, S, D), jnp.float32)
    params = _init_params(kp, D)

    out = cross_modal_attention(query, key_t, value, params, H)
    out = jax.block_until_ready(out)

    ref = _reference(query, key_t, value, params, H)
    assert out.shape == (B, S, D)
    # bf16 MXU operands (f32 accumulation) -> relaxed tolerance vs f32 reference
    assert jnp.allclose(out, ref, atol=3e-2, rtol=3e-2), (
        "mismatch vs reference; max abs err = "
        f"{float(jnp.max(jnp.abs(out - ref)))}")

    print("KERNEL_OK")
</pallas_src>

<mosaic_0001>
module attributes {stable_mosaic.version = 11 : i64} {
  func.func @_cross_modal_attn_kernel(%arg0: i32, %arg1: memref<2x8x32xf32, #tpu.memory_space<vmem>>, %arg2: memref<2x8x32xf32, #tpu.memory_space<vmem>>, %arg3: memref<2x8x32xf32, #tpu.memory_space<vmem>>, %arg4: memref<32x32xf32, #tpu.memory_space<vmem>>, %arg5: memref<32x32xf32, #tpu.memory_space<vmem>>, %arg6: memref<32x32xf32, #tpu.memory_space<vmem>>, %arg7: memref<1x32xf32, #tpu.memory_space<vmem>>, %arg8: memref<1x32xf32, #tpu.memory_space<vmem>>, %arg9: memref<1x32xf32, #tpu.memory_space<vmem>>, %arg10: memref<32x32xf32, #tpu.memory_space<vmem>>, %arg11: memref<1x32xf32, #tpu.memory_space<vmem>>, %arg12: memref<1x32xf32, #tpu.memory_space<vmem>>, %arg13: memref<1x32xf32, #tpu.memory_space<vmem>>, %arg14: memref<2x8x32xf32, #tpu.memory_space<vmem>>) attributes {dimension_semantics = [#tpu.dimension_semantics<parallel>], iteration_bounds = array<i64: 1>, scalar_prefetch = 0 : i64, scratch_operands = 0 : i64, tpu.core_type = #tpu.core_type<tc>, window_params = [{transform_indices = @transform_0, window_bounds = array<i64: 2, 8, 32>}, {transform_indices = @transform_1, window_bounds = array<i64: 2, 8, 32>}, {transform_indices = @transform_2, window_bounds = array<i64: 2, 8, 32>}, {pipeline_mode = #tpu.pipeline_mode<synchronous>, transform_indices = @transform_3, window_bounds = array<i64: 32, 32>}, {pipeline_mode = #tpu.pipeline_mode<synchronous>, transform_indices = @transform_4, window_bounds = array<i64: 32, 32>}, {pipeline_mode = #tpu.pipeline_mode<synchronous>, transform_indices = @transform_5, window_bounds = array<i64: 32, 32>}, {pipeline_mode = #tpu.pipeline_mode<synchronous>, transform_indices = @transform_6, window_bounds = array<i64: 1, 32>}, {pipeline_mode = #tpu.pipeline_mode<synchronous>, transform_indices = @transform_7, window_bounds = array<i64: 1, 32>}, {pipeline_mode = #tpu.pipeline_mode<synchronous>, transform_indices = @transform_8, window_bounds = array<i64: 1, 32>}, {pipeline_mode = #tpu.pipeline_mode<synchronous>, transform_indices = @transform_9, window_bounds = array<i64: 32, 32>}, {pipeline_mode = #tpu.pipeline_mode<synchronous>, transform_indices = @transform_10, window_bounds = array<i64: 1, 32>}, {pipeline_mode = #tpu.pipeline_mode<synchronous>, transform_indices = @transform_11, window_bounds = array<i64: 1, 32>}, {pipeline_mode = #tpu.pipeline_mode<synchronous>, transform_indices = @transform_12, window_bounds = array<i64: 1, 32>}, {transform_indices = @transform_13, window_bounds = array<i64: 2, 8, 32>}]} {
    %c0 = arith.constant 0 : index
    %c0_0 = arith.constant 0 : index
    %c0_1 = arith.constant 0 : index
    %0 = vector.load %arg1[%c0, %c0_0, %c0_1] : memref<2x8x32xf32, #tpu.memory_space<vmem>>, vector<2x8x32xf32>
    %1 = vector.shape_cast %0 : vector<2x8x32xf32> to vector<16x32xf32>
    %2 = arith.truncf %1 : vector<16x32xf32> to vector<16x32xbf16>
    %c0_2 = arith.constant 0 : index
    %c0_3 = arith.constant 0 : index
    %c0_4 = arith.constant 0 : index
    %3 = vector.load %arg2[%c0_2, %c0_3, %c0_4] : memref<2x8x32xf32, #tpu.memory_space<vmem>>, vector<2x8x32xf32>
    %4 = vector.shape_cast %3 : vector<2x8x32xf32> to vector<16x32xf32>
    %5 = arith.truncf %4 : vector<16x32xf32> to vector<16x32xbf16>
    %c0_5 = arith.constant 0 : index
    %c0_6 = arith.constant 0 : index
    %c0_7 = arith.constant 0 : index
    %6 = vector.load %arg3[%c0_5, %c0_6, %c0_7] : memref<2x8x32xf32, #tpu.memory_space<vmem>>, vector<2x8x32xf32>
    %7 = vector.shape_cast %6 : vector<2x8x32xf32> to vector<16x32xf32>
    %8 = arith.truncf %7 : vector<16x32xf32> to vector<16x32xbf16>
    %c0_8 = arith.constant 0 : index
    %c0_9 = arith.constant 0 : index
    %9 = vector.load %arg4[%c0_8, %c0_9] : memref<32x32xf32, #tpu.memory_space<vmem>>, vector<32x32xf32>
    %10 = arith.truncf %9 : vector<32x32xf32> to vector<32x32xbf16>
    %c0_10 = arith.constant 0 : index
    %c0_11 = arith.constant 0 : index
    %11 = vector.load %arg5[%c0_10, %c0_11] : memref<32x32xf32, #tpu.memory_space<vmem>>, vector<32x32xf32>
    %12 = arith.truncf %11 : vector<32x32xf32> to vector<32x32xbf16>
    %c0_12 = arith.constant 0 : index
    %c0_13 = arith.constant 0 : index
    %13 = vector.load %arg6[%c0_12, %c0_13] : memref<32x32xf32, #tpu.memory_space<vmem>>, vector<32x32xf32>
    %14 = arith.truncf %13 : vector<32x32xf32> to vector<32x32xbf16>
    %c0_14 = arith.constant 0 : index
    %c0_15 = arith.constant 0 : index
    %15 = vector.load %arg10[%c0_14, %c0_15] : memref<32x32xf32, #tpu.memory_space<vmem>>, vector<32x32xf32>
    %16 = arith.truncf %15 : vector<32x32xf32> to vector<32x32xbf16>
    %cst = arith.constant dense<0.000000e+00> : vector<16x32xf32>
    %17 = tpu.matmul %2, %10, %cst {dimension_numbers = #tpu.dot_dimension_numbers<[1], [0], [0], [1], [0, 0, 1, 1], [], []>} : vector<16x32xbf16>, vector<32x32xbf16>, vector<16x32xf32> -> vector<16x32xf32>
    %c0_16 = arith.constant 0 : index
    %c0_17 = arith.constant 0 : index
    %18 = vector.load %arg7[%c0_16, %c0_17] : memref<1x32xf32, #tpu.memory_space<vmem>>, vector<1x32xf32>
    %19 = vector.broadcast %18 : vector<1x32xf32> to vector<16x32xf32>
    %20 = arith.addf %17, %19 : vector<16x32xf32>
    %cst_18 = arith.constant dense<0.000000e+00> : vector<16x32xf32>
    %21 = tpu.matmul %5, %12, %cst_18 {dimension_numbers = #tpu.dot_dimension_numbers<[1], [0], [0], [1], [0, 0, 1, 1], [], []>} : vector<16x32xbf16>, vector<32x32xbf16>, vector<16x32xf32> -> vector<16x32xf32>
    %c0_19 = arith.constant 0 : index
    %c0_20 = arith.constant 0 : index
    %22 = vector.load %arg8[%c0_19, %c0_20] : memref<1x32xf32, #tpu.memory_space<vmem>>, vector<1x32xf32>
    %23 = vector.broadcast %22 : vector<1x32xf32> to vector<16x32xf32>
    %24 = arith.addf %21, %23 : vector<16x32xf32>
    %cst_21 = arith.constant dense<0.000000e+00> : vector<16x32xf32>
    %25 = tpu.matmul %8, %14, %cst_21 {dimension_numbers = #tpu.dot_dimension_numbers<[1], [0], [0], [1], [0, 0, 1, 1], [], []>} : vector<16x32xbf16>, vector<32x32xbf16>, vector<16x32xf32> -> vector<16x32xf32>
    %c0_22 = arith.constant 0 : index
    %c0_23 = arith.constant 0 : index
    %26 = vector.load %arg9[%c0_22, %c0_23] : memref<1x32xf32, #tpu.memory_space<vmem>>, vector<1x32xf32>
    %27 = vector.broadcast %26 : vector<1x32xf32> to vector<16x32xf32>
    %28 = arith.addf %25, %27 : vector<16x32xf32>
    %cst_24 = arith.constant 0.000000e+00 : f32
    %29 = vector.broadcast %cst_24 : f32 to vector<16x32xf32>
    %30 = vector.extract_strided_slice %20 {offsets = [0, 0], sizes = [16, 8], strides = [1, 1]} : vector<16x32xf32> to vector<16x8xf32>
    %31 = vector.shape_cast %30 : vector<16x8xf32> to vector<2x8x8xf32>
    %32 = arith.truncf %31 : vector<2x8x8xf32> to vector<2x8x8xbf16>
    %33 = vector.extract_strided_slice %24 {offsets = [0, 0], sizes = [16, 8], strides = [1, 1]} : vector<16x32xf32> to vector<16x8xf32>
    %34 = vector.shape_cast %33 : vector<16x8xf32> to vector<2x8x8xf32>
    %35 = arith.truncf %34 : vector<2x8x8xf32> to vector<2x8x8xbf16>
    %36 = vector.extract_strided_slice %28 {offsets = [0, 0], sizes = [16, 8], strides = [1, 1]} : vector<16x32xf32> to vector<16x8xf32>
    %37 = vector.shape_cast %36 : vector<16x8xf32> to vector<2x8x8xf32>
    %38 = arith.truncf %37 : vector<2x8x8xf32> to vector<2x8x8xbf16>
    %cst_25 = arith.constant dense<0.000000e+00> : vector<2x8x8xf32>
    %39 = tpu.matmul %32, %35, %cst_25 {dimension_numbers = #tpu.dot_dimension_numbers<[2], [2], [1], [1], [0, 0, 0, 1, 1, 1], [0], [0]>} : vector<2x8x8xbf16>, vector<2x8x8xbf16>, vector<2x8x8xf32> -> vector<2x8x8xf32>
    %cst_26 = arith.constant 0.353553385 : f32
    %40 = vector.broadcast %cst_26 : f32 to vector<2x8x8xf32>
    %41 = arith.mulf %39, %40 : vector<2x8x8xf32>
    %cst_27 = arith.constant dense<0xFF800000> : vector<2x8xf32>
    %42 = vector.multi_reduction <maximumf>, %41, %cst_27 [2] : vector<2x8x8xf32> to vector<2x8xf32>
    %43 = vector.shape_cast %42 : vector<2x8xf32> to vector<2x8x1xf32>
    %44 = vector.broadcast %43 : vector<2x8x1xf32> to vector<2x8x8xf32>
    %45 = arith.subf %41, %44 : vector<2x8x8xf32>
    %46 = math.exp %45 : vector<2x8x8xf32>
    %cst_28 = arith.constant dense<0.000000e+00> : vector<2x8xf32>
    %47 = vector.multi_reduction <add>, %46, %cst_28 [2] : vector<2x8x8xf32> to vector<2x8xf32>
    %48 = vector.shape_cast %47 : vector<2x8xf32> to vector<2x8x1xf32>
    %49 = tpu.reciprocal %48 {approx = true} : vector<2x8x1xf32> -> vector<2x8x1xf32>
    %50 = vector.broadcast %49 : vector<2x8x1xf32> to vector<2x8x8xf32>
    %51 = arith.mulf %46, %50 : vector<2x8x8xf32>
    %52 = arith.truncf %51 : vector<2x8x8xf32> to vector<2x8x8xbf16>
    %cst_29 = arith.constant dense<0.000000e+00> : vector<2x8x8xf32>
    %53 = tpu.matmul %52, %38, %cst_29 {dimension_numbers = #tpu.dot_dimension_numbers<[2], [1], [1], [2], [0, 0, 0, 1, 1, 2], [0], [0]>} : vector<2x8x8xbf16>, vector<2x8x8xbf16>, vector<2x8x8xf32> -> vector<2x8x8xf32>
    %54 = vector.shape_cast %53 : vector<2x8x8xf32> to vector<16x8xf32>
    %55 = arith.truncf %54 : vector<16x8xf32> to vector<16x8xbf16>
    %56 = vector.extract_strided_slice %16 {offsets = [0, 0], sizes = [8, 32], strides = [1, 1]} : vector<32x32xbf16> to vector<8x32xbf16>
    %cst_30 = arith.constant dense<0.000000e+00> : vector<16x32xf32>
    %57 = tpu.matmul %55, %56, %cst_30 {dimension_numbers = #tpu.dot_dimension_numbers<[1], [0], [0], [1], [0, 0, 1, 1], [], []>} : vector<16x8xbf16>, vector<8x32xbf16>, vector<16x32xf32> -> vector<16x32xf32>
    %58 = arith.addf %29, %57 : vector<16x32xf32>
    %59 = vector.extract_strided_slice %20 {offsets = [0, 8], sizes = [16, 8], strides = [1, 1]} : vector<16x32xf32> to vector<16x8xf32>
    %60 = vector.shape_cast %59 : vector<16x8xf32> to vector<2x8x8xf32>
    %61 = arith.truncf %60 : vector<2x8x8xf32> to vector<2x8x8xbf16>
    %62 = vector.extract_strided_slice %24 {offsets = [0, 8], sizes = [16, 8], strides = [1, 1]} : vector<16x32xf32> to vector<16x8xf32>
    %63 = vector.shape_cast %62 : vector<16x8xf32> to vector<2x8x8xf32>
    %64 = arith.truncf %63 : vector<2x8x8xf32> to vector<2x8x8xbf16>
    %65 = vector.extract_strided_slice %28 {offsets = [0, 8], sizes = [16, 8], strides = [1, 1]} : vector<16x32xf32> to vector<16x8xf32>
    %66 = vector.shape_cast %65 : vector<16x8xf32> to vector<2x8x8xf32>
    %67 = arith.truncf %66 : vector<2x8x8xf32> to vector<2x8x8xbf16>
    %cst_31 = arith.constant dense<0.000000e+00> : vector<2x8x8xf32>
    %68 = tpu.matmul %61, %64, %cst_31 {dimension_numbers = #tpu.dot_dimension_numbers<[2], [2], [1], [1], [0, 0, 0, 1, 1, 1], [0], [0]>} : vector<2x8x8xbf16>, vector<2x8x8xbf16>, vector<2x8x8xf32> -> vector<2x8x8xf32>
    %cst_32 = arith.constant 0.353553385 : f32
    %69 = vector.broadcast %cst_32 : f32 to vector<2x8x8xf32>
    %70 = arith.mulf %68, %69 : vector<2x8x8xf32>
    %cst_33 = arith.constant dense<0xFF800000> : vector<2x8xf32>
    %71 = vector.multi_reduction <maximumf>, %70, %cst_33 [2] : vector<2x8x8xf32> to vector<2x8xf32>
    %72 = vector.shape_cast %71 : vector<2x8xf32> to vector<2x8x1xf32>
    %73 = vector.broadcast %72 : vector<2x8x1xf32> to vector<2x8x8xf32>
    %74 = arith.subf %70, %73 : vector<2x8x8xf32>
    %75 = math.exp %74 : vector<2x8x8xf32>
    %cst_34 = arith.constant dense<0.000000e+00> : vector<2x8xf32>
    %76 = vector.multi_reduction <add>, %75, %cst_34 [2] : vector<2x8x8xf32> to vector<2x8xf32>
    %77 = vector.shape_cast %76 : vector<2x8xf32> to vector<2x8x1xf32>
    %78 = tpu.reciprocal %77 {approx = true} : vector<2x8x1xf32> -> vector<2x8x1xf32>
    %79 = vector.broadcast %78 : vector<2x8x1xf32> to vector<2x8x8xf32>
    %80 = arith.mulf %75, %79 : vector<2x8x8xf32>
    %81 = arith.truncf %80 : vector<2x8x8xf32> to vector<2x8x8xbf16>
    %cst_35 = arith.constant dense<0.000000e+00> : vector<2x8x8xf32>
    %82 = tpu.matmul %81, %67, %cst_35 {dimension_numbers = #tpu.dot_dimension_numbers<[2], [1], [1], [2], [0, 0, 0, 1, 1, 2], [0], [0]>} : vector<2x8x8xbf16>, vector<2x8x8xbf16>, vector<2x8x8xf32> -> vector<2x8x8xf32>
    %83 = vector.shape_cast %82 : vector<2x8x8xf32> to vector<16x8xf32>
    %84 = arith.truncf %83 : vector<16x8xf32> to vector<16x8xbf16>
    %85 = vector.extract_strided_slice %16 {offsets = [8, 0], sizes = [8, 32], strides = [1, 1]} : vector<32x32xbf16> to vector<8x32xbf16>
    %cst_36 = arith.constant dense<0.000000e+00> : vector<16x32xf32>
    %86 = tpu.matmul %84, %85, %cst_36 {dimension_numbers = #tpu.dot_dimension_numbers<[1], [0], [0], [1], [0, 0, 1, 1], [], []>} : vector<16x8xbf16>, vector<8x32xbf16>, vector<16x32xf32> -> vector<16x32xf32>
    %87 = arith.addf %58, %86 : vector<16x32xf32>
    %88 = vector.extract_strided_slice %20 {offsets = [0, 16], sizes = [16, 8], strides = [1, 1]} : vector<16x32xf32> to vector<16x8xf32>
    %89 = vector.shape_cast %88 : vector<16x8xf32> to vector<2x8x8xf32>
    %90 = arith.truncf %89 : vector<2x8x8xf32> to vector<2x8x8xbf16>
    %91 = vector.extract_strided_slice %24 {offsets = [0, 16], sizes = [16, 8], strides = [1, 1]} : vector<16x32xf32> to vector<16x8xf32>
    %92 = vector.shape_cast %91 : vector<16x8xf32> to vector<2x8x8xf32>
    %93 = arith.truncf %92 : vector<2x8x8xf32> to vector<2x8x8xbf16>
    %94 = vector.extract_strided_slice %28 {offsets = [0, 16], sizes = [16, 8], strides = [1, 1]} : vector<16x32xf32> to vector<16x8xf32>
    %95 = vector.shape_cast %94 : vector<16x8xf32> to vector<2x8x8xf32>
    %96 = arith.truncf %95 : vector<2x8x8xf32> to vector<2x8x8xbf16>
    %cst_37 = arith.constant dense<0.000000e+00> : vector<2x8x8xf32>
    %97 = tpu.matmul %90, %93, %cst_37 {dimension_numbers = #tpu.dot_dimension_numbers<[2], [2], [1], [1], [0, 0, 0, 1, 1, 1], [0], [0]>} : vector<2x8x8xbf16>, vector<2x8x8xbf16>, vector<2x8x8xf32> -> vector<2x8x8xf32>
    %cst_38 = arith.constant 0.353553385 : f32
    %98 = vector.broadcast %cst_38 : f32 to vector<2x8x8xf32>
    %99 = arith.mulf %97, %98 : vector<2x8x8xf32>
    %cst_39 = arith.constant dense<0xFF800000> : vector<2x8xf32>
    %100 = vector.multi_reduction <maximumf>, %99, %cst_39 [2] : vector<2x8x8xf32> to vector<2x8xf32>
    %101 = vector.shape_cast %100 : vector<2x8xf32> to vector<2x8x1xf32>
    %102 = vector.broadcast %101 : vector<2x8x1xf32> to vector<2x8x8xf32>
    %103 = arith.subf %99, %102 : vector<2x8x8xf32>
    %104 = math.exp %103 : vector<2x8x8xf32>
    %cst_40 = arith.constant dense<0.000000e+00> : vector<2x8xf32>
    %105 = vector.multi_reduction <add>, %104, %cst_40 [2] : vector<2x8x8xf32> to vector<2x8xf32>
    %106 = vector.shape_cast %105 : vector<2x8xf32> to vector<2x8x1xf32>
    %107 = tpu.reciprocal %106 {approx = true} : vector<2x8x1xf32> -> vector<2x8x1xf32>
    %108 = vector.broadcast %107 : vector<2x8x1xf32> to vector<2x8x8xf32>
    %109 = arith.mulf %104, %108 : vector<2x8x8xf32>
    %110 = arith.truncf %109 : vector<2x8x8xf32> to vector<2x8x8xbf16>
    %cst_41 = arith.constant dense<0.000000e+00> : vector<2x8x8xf32>
    %111 = tpu.matmul %110, %96, %cst_41 {dimension_numbers = #tpu.dot_dimension_numbers<[2], [1], [1], [2], [0, 0, 0, 1, 1, 2], [0], [0]>} : vector<2x8x8xbf16>, vector<2x8x8xbf16>, vector<2x8x8xf32> -> vector<2x8x8xf32>
    %112 = vector.shape_cast %111 : vector<2x8x8xf32> to vector<16x8xf32>
    %113 = arith.truncf %112 : vector<16x8xf32> to vector<16x8xbf16>
    %114 = vector.extract_strided_slice %16 {offsets = [16, 0], sizes = [8, 32], strides = [1, 1]} : vector<32x32xbf16> to vector<8x32xbf16>
    %cst_42 = arith.constant dense<0.000000e+00> : vector<16x32xf32>
    %115 = tpu.matmul %113, %114, %cst_42 {dimension_numbers = #tpu.dot_dimension_numbers<[1], [0], [0], [1], [0, 0, 1, 1], [], []>} : vector<16x8xbf16>, vector<8x32xbf16>, vector<16x32xf32> -> vector<16x32xf32>
    %116 = arith.addf %87, %115 : vector<16x32xf32>
    %117 = vector.extract_strided_slice %20 {offsets = [0, 24], sizes = [16, 8], strides = [1, 1]} : vector<16x32xf32> to vector<16x8xf32>
    %118 = vector.shape_cast %117 : vector<16x8xf32> to vector<2x8x8xf32>
    %119 = arith.truncf %118 : vector<2x8x8xf32> to vector<2x8x8xbf16>
    %120 = vector.extract_strided_slice %24 {offsets = [0, 24], sizes = [16, 8], strides = [1, 1]} : vector<16x32xf32> to vector<16x8xf32>
    %121 = vector.shape_cast %120 : vector<16x8xf32> to vector<2x8x8xf32>
    %122 = arith.truncf %121 : vector<2x8x8xf32> to vector<2x8x8xbf16>
    %123 = vector.extract_strided_slice %28 {offsets = [0, 24], sizes = [16, 8], strides = [1, 1]} : vector<16x32xf32> to vector<16x8xf32>
    %124 = vector.shape_cast %123 : vector<16x8xf32> to vector<2x8x8xf32>
    %125 = arith.truncf %124 : vector<2x8x8xf32> to vector<2x8x8xbf16>
    %cst_43 = arith.constant dense<0.000000e+00> : vector<2x8x8xf32>
    %126 = tpu.matmul %119, %122, %cst_43 {dimension_numbers = #tpu.dot_dimension_numbers<[2], [2], [1], [1], [0, 0, 0, 1, 1, 1], [0], [0]>} : vector<2x8x8xbf16>, vector<2x8x8xbf16>, vector<2x8x8xf32> -> vector<2x8x8xf32>
    %cst_44 = arith.constant 0.353553385 : f32
    %127 = vector.broadcast %cst_44 : f32 to vector<2x8x8xf32>
    %128 = arith.mulf %126, %127 : vector<2x8x8xf32>
    %cst_45 = arith.constant dense<0xFF800000> : vector<2x8xf32>
    %129 = vector.multi_reduction <maximumf>, %128, %cst_45 [2] : vector<2x8x8xf32> to vector<2x8xf32>
    %130 = vector.shape_cast %129 : vector<2x8xf32> to vector<2x8x1xf32>
    %131 = vector.broadcast %130 : vector<2x8x1xf32> to vector<2x8x8xf32>
    %132 = arith.subf %128, %131 : vector<2x8x8xf32>
    %133 = math.exp %132 : vector<2x8x8xf32>
    %cst_46 = arith.constant dense<0.000000e+00> : vector<2x8xf32>
    %134 = vector.multi_reduction <add>, %133, %cst_46 [2] : vector<2x8x8xf32> to vector<2x8xf32>
    %135 = vector.shape_cast %134 : vector<2x8xf32> to vector<2x8x1xf32>
    %136 = tpu.reciprocal %135 {approx = true} : vector<2x8x1xf32> -> vector<2x8x1xf32>
    %137 = vector.broadcast %136 : vector<2x8x1xf32> to vector<2x8x8xf32>
    %138 = arith.mulf %133, %137 : vector<2x8x8xf32>
    %139 = arith.truncf %138 : vector<2x8x8xf32> to vector<2x8x8xbf16>
    %cst_47 = arith.constant dense<0.000000e+00> : vector<2x8x8xf32>
    %140 = tpu.matmul %139, %125, %cst_47 {dimension_numbers = #tpu.dot_dimension_numbers<[2], [1], [1], [2], [0, 0, 0, 1, 1, 2], [0], [0]>} : vector<2x8x8xbf16>, vector<2x8x8xbf16>, vector<2x8x8xf32> -> vector<2x8x8xf32>
    %141 = vector.shape_cast %140 : vector<2x8x8xf32> to vector<16x8xf32>
    %142 = arith.truncf %141 : vector<16x8xf32> to vector<16x8xbf16>
    %143 = vector.extract_strided_slice %16 {offsets = [24, 0], sizes = [8, 32], strides = [1, 1]} : vector<32x32xbf16> to vector<8x32xbf16>
    %cst_48 = arith.constant dense<0.000000e+00> : vector<16x32xf32>
    %144 = tpu.matmul %142, %143, %cst_48 {dimension_numbers = #tpu.dot_dimension_numbers<[1], [0], [0], [1], [0, 0, 1, 1], [], []>} : vector<16x8xbf16>, vector<8x32xbf16>, vector<16x32xf32> -> vector<16x32xf32>
    %145 = arith.addf %116, %144 : vector<16x32xf32>
    %c0_49 = arith.constant 0 : index
    %c0_50 = arith.constant 0 : index
    %146 = vector.load %arg11[%c0_49, %c0_50] : memref<1x32xf32, #tpu.memory_space<vmem>>, vector<1x32xf32>
    %147 = vector.broadcast %146 : vector<1x32xf32> to vector<16x32xf32>
    %148 = arith.addf %145, %147 : vector<16x32xf32>
    %149 = arith.addf %1, %148 : vector<16x32xf32>
    %cst_51 = arith.constant dense<0.000000e+00> : vector<16xf32>
    %150 = vector.multi_reduction <add>, %149, %cst_51 [1] : vector<16x32xf32> to vector<16xf32>
    %151 = vector.shape_cast %150 : vector<16xf32> to vector<16x1xf32>
    %cst_52 = arith.constant 3.200000e+01 : f32
    %152 = vector.broadcast %cst_52 : f32 to vector<16x1xf32>
    %153 = arith.divf %151, %152 : vector<16x1xf32>
    %154 = vector.broadcast %153 : vector<16x1xf32> to vector<16x32xf32>
    %155 = arith.subf %149, %154 : vector<16x32xf32>
    %156 = arith.mulf %155, %155 : vector<16x32xf32>
    %cst_53 = arith.constant dense<0.000000e+00> : vector<16xf32>
    %157 = vector.multi_reduction <add>, %156, %cst_53 [1] : vector<16x32xf32> to vector<16xf32>
    %158 = vector.shape_cast %157 : vector<16xf32> to vector<16x1xf32>
    %cst_54 = arith.constant 3.200000e+01 : f32
    %159 = vector.broadcast %cst_54 : f32 to vector<16x1xf32>
    %160 = arith.divf %158, %159 : vector<16x1xf32>
    %cst_55 = arith.constant 9.99999974E-6 : f32
    %161 = vector.broadcast %cst_55 : f32 to vector<16x1xf32>
    %162 = arith.addf %160, %161 : vector<16x1xf32>
    %163 = math.rsqrt %162 : vector<16x1xf32>
    %164 = vector.broadcast %163 : vector<16x1xf32> to vector<16x32xf32>
    %165 = arith.mulf %155, %164 : vector<16x32xf32>
    %c0_56 = arith.constant 0 : index
    %c0_57 = arith.constant 0 : index
    %166 = vector.load %arg12[%c0_56, %c0_57] : memref<1x32xf32, #tpu.memory_space<vmem>>, vector<1x32xf32>
    %167 = vector.broadcast %166 : vector<1x32xf32> to vector<16x32xf32>
    %168 = arith.mulf %165, %167 : vector<16x32xf32>
    %c0_58 = arith.constant 0 : index
    %c0_59 = arith.constant 0 : index
    %169 = vector.load %arg13[%c0_58, %c0_59] : memref<1x32xf32, #tpu.memory_space<vmem>>, vector<1x32xf32>
    %170 = vector.broadcast %169 : vector<1x32xf32> to vector<16x32xf32>
    %171 = arith.addf %168, %170 : vector<16x32xf32>
    %172 = vector.shape_cast %171 : vector<16x32xf32> to vector<2x8x32xf32>
    %c0_60 = arith.constant 0 : index
    %c0_61 = arith.constant 0 : index
    %c0_62 = arith.constant 0 : index
    %173 = vector.load %arg14[%c0_60, %c0_61, %c0_62] : memref<2x8x32xf32, #tpu.memory_space<vmem>>, vector<2x8x32xf32>
    tpu.vector_store %arg14[%c0_60, %c0_61, %c0_62], %172 {strides = array<i32>} : memref<2x8x32xf32, #tpu.memory_space<vmem>>, vector<2x8x32xf32>,
    return
  }
  func.func @transform_0(%arg0: i32) -> (i32, i32, i32) {
    %c0_i32 = arith.constant 0 : i32
    %c0_i32_0 = arith.constant 0 : i32
    %c0_i32_1 = arith.constant 0 : i32
    return %arg0, %c0_i32, %c0_i32_0 : i32, i32, i32
  }
  func.func @transform_1(%arg0: i32) -> (i32, i32, i32) {
    %c0_i32 = arith.constant 0 : i32
    %c0_i32_0 = arith.constant 0 : i32
    %c0_i32_1 = arith.constant 0 : i32
    return %arg0, %c0_i32, %c0_i32_0 : i32, i32, i32
  }
  func.func @transform_2(%arg0: i32) -> (i32, i32, i32) {
    %c0_i32 = arith.constant 0 : i32
    %c0_i32_0 = arith.constant 0 : i32
    %c0_i32_1 = arith.constant 0 : i32
    return %arg0, %c0_i32, %c0_i32_0 : i32, i32, i32
  }
  func.func @transform_3(%arg0: i32) -> (i32, i32) {
    %c0_i32 = arith.constant 0 : i32
    %c0_i32_0 = arith.constant 0 : i32
    %c0_i32_1 = arith.constant 0 : i32
    return %c0_i32, %c0_i32_0 : i32, i32
  }
  func.func @transform_4(%arg0: i32) -> (i32, i32) {
    %c0_i32 = arith.constant 0 : i32
    %c0_i32_0 = arith.constant 0 : i32
    %c0_i32_1 = arith.constant 0 : i32
    return %c0_i32, %c0_i32_0 : i32, i32
  }
  func.func @transform_5(%arg0: i32) -> (i32, i32) {
    %c0_i32 = arith.constant 0 : i32
    %c0_i32_0 = arith.constant 0 : i32
    %c0_i32_1 = arith.constant 0 : i32
    return %c0_i32, %c0_i32_0 : i32, i32
  }
  func.func @transform_6(%arg0: i32) -> (i32, i32) {
    %c0_i32 = arith.constant 0 : i32
    %c0_i32_0 = arith.constant 0 : i32
    %c0_i32_1 = arith.constant 0 : i32
    return %c0_i32, %c0_i32_0 : i32, i32
  }
  func.func @transform_7(%arg0: i32) -> (i32, i32) {
    %c0_i32 = arith.constant 0 : i32
    %c0_i32_0 = arith.constant 0 : i32
    %c0_i32_1 = arith.constant 0 : i32
    return %c0_i32, %c0_i32_0 : i32, i32
  }
  func.func @transform_8(%arg0: i32) -> (i32, i32) {
    %c0_i32 = arith.constant 0 : i32
    %c0_i32_0 = arith.constant 0 : i32
    %c0_i32_1 = arith.constant 0 : i32
    return %c0_i32, %c0_i32_0 : i32, i32
  }
  func.func @transform_9(%arg0: i32) -> (i32, i32) {
    %c0_i32 = arith.constant 0 : i32
    %c0_i32_0 = arith.constant 0 : i32
    %c0_i32_1 = arith.constant 0 : i32
    return %c0_i32, %c0_i32_0 : i32, i32
  }
  func.func @transform_10(%arg0: i32) -> (i32, i32) {
    %c0_i32 = arith.constant 0 : i32
    %c0_i32_0 = arith.constant 0 : i32
    %c0_i32_1 = arith.constant 0 : i32
    return %c0_i32, %c0_i32_0 : i32, i32
  }
  func.func @transform_11(%arg0: i32) -> (i32, i32) {
    %c0_i32 = arith.constant 0 : i32
    %c0_i32_0 = arith.constant 0 : i32
    %c0_i32_1 = arith.constant 0 : i32
    return %c0_i32, %c0_i32_0 : i32, i32
  }
  func.func @transform_12(%arg0: i32) -> (i32, i32) {
    %c0_i32 = arith.constant 0 : i32
    %c0_i32_0 = arith.constant 0 : i32
    %c0_i32_1 = arith.constant 0 : i32
    return %c0_i32, %c0_i32_0 : i32, i32
  }
  func.func @transform_13(%arg0: i32) -> (i32, i32, i32) {
    %c0_i32 = arith.constant 0 : i32
    %c0_i32_0 = arith.constant 0 : i32
    %c0_i32_1 = arith.constant 0 : i32
    return %arg0, %c0_i32, %c0_i32_0 : i32, i32, i32
  }
}

</mosaic_0001>

<llo_original>
// kernel: tpu_custom_call.1
$region0: #{tpu_custom_call.1}
  #allocation0 [shape = 'u32[]', space=smem, size = 0x4, offset = 0x4, fixed_abs, tag = 'smem constant byte address 0x4 - core index']
  #allocation1 [shape = 'u32[144,128]{1,0:T(1,128)}', space=vmem, size = 0x12000, scoped, tag = 'internal scratch']
  %s0 = inlined_call_operand.hbm [shape: f32[2,8,32], index: 0, kind: input, shape index: {}]
  %s1 = inlined_call_operand.hbm [shape: f32[2,8,32], index: 1, kind: input, shape index: {}]
  %s2 = inlined_call_operand.hbm [shape: f32[2,8,32], index: 2, kind: input, shape index: {}]
  %s3 = inlined_call_operand.hbm [shape: f32[32,32], index: 3, kind: input, shape index: {}]
  %s4 = inlined_call_operand.hbm [shape: f32[32,32], index: 4, kind: input, shape index: {}]
  %s5 = inlined_call_operand.hbm [shape: f32[32,32], index: 5, kind: input, shape index: {}]
  %s6 = inlined_call_operand.vmem [shape: f32[1,32], index: 6, kind: input, shape index: {}]
  %s7 = inlined_call_operand.vmem [shape: f32[1,32], index: 7, kind: input, shape index: {}]
  %s8 = inlined_call_operand.hbm [shape: f32[1,32], index: 8, kind: input, shape index: {}]
  %s9 = inlined_call_operand.vmem [shape: f32[32,32], index: 9, kind: input, shape index: {}]
  %s10 = inlined_call_operand.vmem [shape: f32[1,32], index: 10, kind: input, shape index: {}]
  %s11 = inlined_call_operand.vmem [shape: f32[1,32], index: 11, kind: input, shape index: {}]
  %s12 = inlined_call_operand.vmem [shape: f32[1,32], index: 12, kind: input, shape index: {}]
  %s13 = inlined_call_operand.hbm [shape: f32[2,8,32], index: 13, kind: output, shape index: {}]
  %s14 = sld [smem:[#allocation0]]
  $region90: #{tpu_custom_call.1} parent=0
    _
  %s16 = ssub.s32 1, %s14
  %s17 = scalar_select 0, %s16, %s14
  $region1: #{tpu_custom_call.1} parent=0
    #allocation2 [shape = 'u8[8192]{0}', space=vmem, size = 0x2000, scoped, tag = 'input window, operand 0, single buffered']
    #allocation3 [shape = 's32[1]{0}', space=sflag, size = 0x4, scoped, tag = 'scoped memory for tpu_custom_call.1']
    #allocation4 [shape = 's32[1]{0}', space=sflag, size = 0x4, scoped, tag = 'scoped memory for tpu_custom_call.1']
    #allocation5 [shape = 'u8[8192]{0}', space=vmem, size = 0x2000, scoped, tag = 'input window, operand 1, single buffered']
    #allocation6 [shape = 's32[1]{0}', space=sflag, size = 0x4, scoped, tag = 'scoped memory for tpu_custom_call.1']
    #allocation7 [shape = 'u8[8192]{0}', space=vmem, size = 0x2000, scoped, tag = 'input window, operand 2, single buffered']
    #allocation8 [shape = 'u8[16384]{0}', space=vmem, size = 0x4000, scoped, tag = 'input window, operand 3, single buffered']
    #allocation9 [shape = 's32[1]{0}', space=sflag, size = 0x4, scoped, tag = 'scoped memory for tpu_custom_call.1']
    #allocation10 [shape = 'u8[16384]{0}', space=vmem, size = 0x4000, scoped, tag = 'input window, operand 4, single buffered']
    #allocation11 [shape = 'u8[16384]{0}', space=vmem, size = 0x4000, scoped, tag = 'input window, operand 5, single buffered']
    #allocation12 [shape = 's32[1]{0}', space=sflag, size = 0x4, scoped, tag = 'scoped memory for tpu_custom_call.1']
    #allocation13 [shape = 'u8[512]{0}', space=vmem, size = 0x400, scoped, tag = 'input window, operand 8, single buffered']
    #allocation14 [shape = 'u8[8192]{0}', space=vmem, size = 0x2000, scoped, tag = 'output window, operand 0, single buffered']
    %18 = vsyncpa [#allocation3], 0
    %19 = vsyncpa [#allocation6], 0
    %20 = vsyncpa [#allocation9], 0
    %21 = vsyncpa [#allocation12], 0
    %22 = vsyncpa [#allocation4], 0
    // Predicated region
    $region2: #{tpu_custom_call.1} parent=1 // pred_check
      _
    $region3: #{tpu_custom_call.1} parent=1 // pred_check_branch
      %24 = sbr.rel (0) target = $region5
    $region4: #{tpu_custom_call.1} parent=1 // pred_region
      %s26 = ssub.s32 256, 256
      %27 = vsyncadd [#allocation3], %s26
      %s28 = sshll.u32 [#allocation2], 4
      %s29 = int_to_ptr.vmem [resolvable:$true] %s28
      %34 = dma.hbm_to_vmem [thread:$0]  %s0, 256, %s29, [#allocation3], 128, 128, 8
    $region5: #{tpu_custom_call.1} parent=1 // pred_fallthru
      _
    // Predicated region
    $region6: #{tpu_custom_call.1} parent=1 // pred_check
      _
    $region7: #{tpu_custom_call.1} parent=1 // pred_check_branch
      %36 = sbr.rel (0) target = $region9
    $region8: #{tpu_custom_call.1} parent=1 // pred_region
      %s38 = ssub.s32 256, 256
      %39 = vsyncadd [#allocation6], %s38
      %s40 = sshll.u32 [#allocation5], 4
      %s41 = int_to_ptr.vmem [resolvable:$true] %s40
      %46 = dma.hbm_to_vmem [thread:$0]  %s1, 256, %s41, [#allocation6], 128, 128, 8
    $region9: #{tpu_custom_call.1} parent=1 // pred_fallthru
      _
    // Predicated region
    $region10: #{tpu_custom_call.1} parent=1 // pred_check
      _
    $region11: #{tpu_custom_call.1} parent=1 // pred_check_branch
      %48 = sbr.rel (0) target = $region13
    $region12: #{tpu_custom_call.1} parent=1 // pred_region
      %s50 = ssub.s32 256, 256
      %51 = vsyncadd [#allocation6], %s50
      %s52 = sshll.u32 [#allocation7], 4
      %s53 = int_to_ptr.vmem [resolvable:$true] %s52
      %58 = dma.hbm_to_vmem [thread:$0]  %s2, 256, %s53, [#allocation6], 128, 128, 8
    $region13: #{tpu_custom_call.1} parent=1 // pred_fallthru
      _
    // Predicated region
    $region14: #{tpu_custom_call.1} parent=1 // pred_check
      _
    $region15: #{tpu_custom_call.1} parent=1 // pred_check_branch
      %60 = sbr.rel (0) target = $region17
    $region16: #{tpu_custom_call.1} parent=1 // pred_region
      %s62 = ssub.s32 512, 512
      %63 = vsyncadd [#allocation9], %s62
      %s64 = sshll.u32 [#allocation8], 4
      %s65 = int_to_ptr.vmem [resolvable:$true] %s64
      %70 = dma.hbm_to_vmem [thread:$0]  %s3, 512, %s65, [#allocation9], 128, 128, 8
    $region17: #{tpu_custom_call.1} parent=1 // pred_fallthru
      _
    // Predicated region
    $region18: #{tpu_custom_call.1} parent=1 // pred_check
      _
    $region19: #{tpu_custom_call.1} parent=1 // pred_check_branch
      %72 = sbr.rel (0) target = $region21
    $region20: #{tpu_custom_call.1} parent=1 // pred_region
      %s74 = ssub.s32 512, 512
      %75 = vsyncadd [#allocation9], %s74
      %s76 = sshll.u32 [#allocation10], 4
      %s77 = int_to_ptr.vmem [resolvable:$true] %s76
      %82 = dma.hbm_to_vmem [thread:$0]  %s4, 512, %s77, [#allocation9], 128, 128, 8
    $region21: #{tpu_custom_call.1} parent=1 // pred_fallthru
      _
    // Predicated region
    $region22: #{tpu_custom_call.1} parent=1 // pred_check
      _
    $region23: #{tpu_custom_call.1} parent=1 // pred_check_branch
      %84 = sbr.rel (0) target = $region25
    $region24: #{tpu_custom_call.1} parent=1 // pred_region
      %s86 = ssub.s32 512, 512
      %87 = vsyncadd [#allocation12], %s86
      %s88 = sshll.u32 [#allocation11], 4
      %s89 = int_to_ptr.vmem [resolvable:$true] %s88
      %94 = dma.hbm_to_vmem [thread:$0]  %s5, 512, %s89, [#allocation12], 128, 128, 8
    $region25: #{tpu_custom_call.1} parent=1 // pred_fallthru
      _
    // Predicated region
    $region26: #{tpu_custom_call.1} parent=1 // pred_check
      _
    $region27: #{tpu_custom_call.1} parent=1 // pred_check_branch
      %96 = sbr.rel (0) target = $region29
    $region28: #{tpu_custom_call.1} parent=1 // pred_region
      _
    $region29: #{tpu_custom_call.1} parent=1 // pred_fallthru
      _
    // Predicated region
    $region30: #{tpu_custom_call.1} parent=1 // pred_check
      _
    $region31: #{tpu_custom_call.1} parent=1 // pred_check_branch
      %98 = sbr.rel (0) target = $region33
    $region32: #{tpu_custom_call.1} parent=1 // pred_region
      _
    $region33: #{tpu_custom_call.1} parent=1 // pred_fallthru
      _
    // Predicated region
    $region34: #{tpu_custom_call.1} parent=1 // pred_check
      _
    $region35: #{tpu_custom_call.1} parent=1 // pred_check_branch
      %100 = sbr.rel (0) target = $region37
    $region36: #{tpu_custom_call.1} parent=1 // pred_region
      %s102 = ssub.s32 16, 16
      %103 = vsyncadd [#allocation12], %s102
      %s105 = sshll.u32 [#allocation13], 4
      %s106 = int_to_ptr.vmem [resolvable:$true] %s105
      %108 = dma.hbm_to_vmem [thread:$0]  %s8, 16, %s106, [#allocation12]
    $region37: #{tpu_custom_call.1} parent=1 // pred_fallthru
      _
    // Predicated region
    $region38: #{tpu_custom_call.1} parent=1 // pred_check
      _
    $region39: #{tpu_custom_call.1} parent=1 // pred_check_branch
      %110 = sbr.rel (0) target = $region41
    $region40: #{tpu_custom_call.1} parent=1 // pred_region
      _
    $region41: #{tpu_custom_call.1} parent=1 // pred_fallthru
      _
    // Predicated region
    $region42: #{tpu_custom_call.1} parent=1 // pred_check
      _
    $region43: #{tpu_custom_call.1} parent=1 // pred_check_branch
      %112 = sbr.rel (0) target = $region45
    $region44: #{tpu_custom_call.1} parent=1 // pred_region
      _
    $region45: #{tpu_custom_call.1} parent=1 // pred_fallthru
      _
    // Predicated region
    $region46: #{tpu_custom_call.1} parent=1 // pred_check
      _
    $region47: #{tpu_custom_call.1} parent=1 // pred_check_branch
      %114 = sbr.rel (0) target = $region49
    $region48: #{tpu_custom_call.1} parent=1 // pred_region
      _
    $region49: #{tpu_custom_call.1} parent=1 // pred_fallthru
      _
    // Predicated region
    $region50: #{tpu_custom_call.1} parent=1 // pred_check
      _
    $region51: #{tpu_custom_call.1} parent=1 // pred_check_branch
      %116 = sbr.rel (0) target = $region53
    $region52: #{tpu_custom_call.1} parent=1 // pred_region
      _
    $region53: #{tpu_custom_call.1} parent=1 // pred_fallthru
      _
    // Predicated region
    $region54: #{tpu_custom_call.1} parent=1 // pred_check
      _
    $region55: #{tpu_custom_call.1} parent=1 // pred_check_branch
      %118 = sbr.rel (0) target = $region57
    $region56: #{tpu_custom_call.1} parent=1 // pred_region
      %119 = dma.done [#allocation3], 256
    $region57: #{tpu_custom_call.1} parent=1 // pred_fallthru
      _
    // Predicated region
    $region58: #{tpu_custom_call.1} parent=1 // pred_check
      _
    $region59: #{tpu_custom_call.1} parent=1 // pred_check_branch
      %121 = sbr.rel (0) target = $region61
    $region60: #{tpu_custom_call.1} parent=1 // pred_region
      %122 = dma.done [#allocation6], 256
    $region61: #{tpu_custom_call.1} parent=1 // pred_fallthru
      _
    // Predicated region
    $region62: #{tpu_custom_call.1} parent=1 // pred_check
      _
    $region63: #{tpu_custom_call.1} parent=1 // pred_check_branch
      %124 = sbr.rel (0) target = $region65
    $region64: #{tpu_custom_call.1} parent=1 // pred_region
      %125 = dma.done [#allocation6], 256
    $region65: #{tpu_custom_call.1} parent=1 // pred_fallthru
      _
    // Predicated region
    $region66: #{tpu_custom_call.1} parent=1 // pred_check
      _
    $region67: #{tpu_custom_call.1} parent=1 // pred_check_branch
      %127 = sbr.rel (0) target = $region69
    $region68: #{tpu_custom_call.1} parent=1 // pred_region
      %128 = dma.done [#allocation9], 512
    $region69: #{tpu_custom_call.1} parent=1 // pred_fallthru
      _
    // Predicated region
    $region70: #{tpu_custom_call.1} parent=1 // pred_check
      _
    $region71: #{tpu_custom_call.1} parent=1 // pred_check_branch
      %130 = sbr.rel (0) target = $region73
    $region72: #{tpu_custom_call.1} parent=1 // pred_region
      %131 = dma.done [#allocation9], 512
    $region73: #{tpu_custom_call.1} parent=1 // pred_fallthru
      _
    // Predicated region
    $region74: #{tpu_custom_call.1} parent=1 // pred_check
      _
    $region75: #{tpu_custom_call.1} parent=1 // pred_check_branch
      %133 = sbr.rel (0) target = $region77
    $region76: #{tpu_custom_call.1} parent=1 // pred_region
      %134 = dma.done [#allocation12], 512
    $region77: #{tpu_custom_call.1} parent=1 // pred_fallthru
      _
    // Predicated region
    $region78: #{tpu_custom_call.1} parent=1 // pred_check
      _
    $region79: #{tpu_custom_call.1} parent=1 // pred_check_branch
      %136 = sbr.rel (0) target = $region81
    $region80: #{tpu_custom_call.1} parent=1 // pred_region
      %137 = dma.done [#allocation12], 16
    $region81: #{tpu_custom_call.1} parent=1 // pred_fallthru
      _
    %v139 = vld [vmem:[#allocation2] sm:$0xff]
    %v140 = vld [vmem:[#allocation2 + $0x8] sm:$0xff]
    %v141 = vpack.c.bf16 %v140, %v139
    %v142 = vld [vmem:[#allocation5] sm:$0xff]
    %v143 = vld [vmem:[#allocation5 + $0x8] sm:$0xff]
    %v144 = vpack.c.bf16 %v143, %v142
    %v145 = vld [vmem:[#allocation7] sm:$0xff]
    %v146 = vld [vmem:[#allocation7 + $0x8] sm:$0xff]
    %v147 = vpack.c.bf16 %v146, %v145
    %v148 = vld [vmem:[#allocation8] sm:$0xff]
    %v149 = vld [vmem:[#allocation8 + $0x8] sm:$0xff]
    %v150 = vld [vmem:[#allocation8 + $0x10] sm:$0xff]
    %v151 = vld [vmem:[#allocation8 + $0x18] sm:$0xff]
    %v152 = vpack.c.bf16 %v149, %v148
    %v153 = vpack.c.bf16 %v151, %v150
    %v154 = vld [vmem:[#allocation10] sm:$0xff]
    %v155 = vld [vmem:[#allocation10 + $0x8] sm:$0xff]
    %v156 = vld [vmem:[#allocation10 + $0x10] sm:$0xff]
    %v157 = vld [vmem:[#allocation10 + $0x18] sm:$0xff]
    %v158 = vpack.c.bf16 %v155, %v154
    %v159 = vpack.c.bf16 %v157, %v156
    %v160 = vld [vmem:[#allocation11] sm:$0xff]
    %v161 = vld [vmem:[#allocation11 + $0x8] sm:$0xff]
    %v162 = vld [vmem:[#allocation11 + $0x10] sm:$0xff]
    %v163 = vld [vmem:[#allocation11 + $0x18] sm:$0xff]
    %v164 = vpack.c.bf16 %v161, %v160
    %v165 = vpack.c.bf16 %v163, %v162
    %v166 = vld [vmem:[%s9] sm:$0xff]
    %v167 = vld [vmem:[%s9 + $0x8] sm:$0xff]
    %v168 = vld [vmem:[%s9 + $0x10] sm:$0xff]
    %v169 = vld [vmem:[%s9 + $0x18] sm:$0xff]
    %v170 = vpack.c.bf16 %v167, %v166
    %v171 = vpack.c.bf16 %v169, %v168
    %v172 = vld [vmem:[%s6] sm:$0x1]
    %v174 = vlaneseq
    %v175 = vshrl.u32 %v174, 7
    %v176 = vsub.s32 0, %v175
    %v177 = vrot.slane %v172, %v176
    %vm179 = vcmask 261120
    %v181 = vsel %vm179, %v141, 0
    %183 = vmatprep.subr.bf16.mxu0 0
    %184 = vmatpush1.bf16.msra.mxu0 %v152
    %185 = vmatprep.subr.bf16.mxu0 0
    %186 = vmatpush1.bf16.msra.mxu0 %v153
    %187 = vmatprep.subr.bf16.mxu0 0
    %188 = vmatpush1.bf16.msra.mxu0 0
    %189 = vmatprep.subr.bf16.mxu0 0
    %190 = vmatpush1.bf16.msra.mxu0 0
    %191 = vmatprep.subr.bf16.mxu0 0
    %192 = vmatpush1.bf16.msra.mxu0 0
    %193 = vmatprep.subr.bf16.mxu0 0
    %194 = vmatpush1.bf16.msra.mxu0 0
    %195 = vmatprep.subr.bf16.mxu0 0
    %196 = vmatpush1.bf16.msra.mxu0 0
    %197 = vmatprep.subr.bf16.mxu0 0
    %198 = vmatpush1.bf16.msra.mxu0 0
    %199 = vmatprep.subr.bf16.mxu0 0
    %200 = vmatpush1.bf16.msra.mxu0 0
    %201 = vmatprep.subr.bf16.mxu0 0
    %202 = vmatpush1.bf16.msra.mxu0 0
    %203 = vmatprep.subr.bf16.mxu0 0
    %204 = vmatpush1.bf16.msra.mxu0 0
    %205 = vmatprep.subr.bf16.mxu0 0
    %206 = vmatpush1.bf16.msra.mxu0 0
    %207 = vmatprep.subr.bf16.mxu0 0
    %208 = vmatpush1.bf16.msra.mxu0 0
    %209 = vmatprep.subr.bf16.mxu0 0
    %210 = vmatpush1.bf16.msra.mxu0 0
    %211 = vmatprep.subr.bf16.mxu0 0
    %212 = vmatpush1.bf16.msra.mxu0 0
    %213 = vmatprep.subr.bf16.mxu0 0
    %214 = vmatpush1.bf16.msra.mxu0 0
    %215 = vmatprep.mubr.bf16.mxu0 0
    %216 = vmatmul.mubr.bf16.gmra.mrb[0].mxu0 %v181
    %v217 = vpop.f32.mrb[0].mxu0
    %v218 = vadd.f32 %v177, %v217
    %v219 = vpop.f32.mrb[0].mxu0
    %v220 = vpop.f32.mrb[0].mxu0
    %v221 = vadd.f32 %v177, %v220
    %v222 = vpop.f32.mrb[0].mxu0
    %223 = vdwg.mxu0
    %v224 = vld [vmem:[%s7] sm:$0x1]
    %v226 = vlaneseq
    %v227 = vshrl.u32 %v226, 7
    %v228 = vsub.s32 0, %v227
    %v229 = vrot.slane %v224, %v228
    %v232 = vsel %vm179, %v144, 0
    %234 = vmatprep.subr.bf16.mxu0 0
    %235 = vmatpush1.bf16.msra.mxu0 %v158
    %236 = vmatprep.subr.bf16.mxu0 0
    %237 = vmatpush1.bf16.msra.mxu0 %v159
    %238 = vmatprep.subr.bf16.mxu0 0
    %239 = vmatpush1.bf16.msra.mxu0 0
    %240 = vmatprep.subr.bf16.mxu0 0
    %241 = vmatpush1.bf16.msra.mxu0 0
    %242 = vmatprep.subr.bf16.mxu0 0
    %243 = vmatpush1.bf16.msra.mxu0 0
    %244 = vmatprep.subr.bf16.mxu0 0
    %245 = vmatpush1.bf16.msra.mxu0 0
    %246 = vmatprep.subr.bf16.mxu0 0
    %247 = vmatpush1.bf16.msra.mxu0 0
    %248 = vmatprep.subr.bf16.mxu0 0
    %249 = vmatpush1.bf16.msra.mxu0 0
    %250 = vmatprep.subr.bf16.mxu0 0
    %251 = vmatpush1.bf16.msra.mxu0 0
    %252 = vmatprep.subr.bf16.mxu0 0
    %253 = vmatpush1.bf16.msra.mxu0 0
    %254 = vmatprep.subr.bf16.mxu0 0
    %255 = vmatpush1.bf16.msra.mxu0 0
    %256 = vmatprep.subr.bf16.mxu0 0
    %257 = vmatpush1.bf16.msra.mxu0 0
    %258 = vmatprep.subr.bf16.mxu0 0
    %259 = vmatpush1.bf16.msra.mxu0 0
    %260 = vmatprep.subr.bf16.mxu0 0
    %261 = vmatpush1.bf16.msra.mxu0 0
    %262 = vmatprep.subr.bf16.mxu0 0
    %263 = vmatpush1.bf16.msra.mxu0 0
    %264 = vmatprep.subr.bf16.mxu0 0
    %265 = vmatpush1.bf16.msra.mxu0 0
    %266 = vmatprep.mubr.bf16.mxu0 0
    %267 = vmatmul.mubr.bf16.gmra.mrb[0].mxu0 %v232
    %v268 = vpop.f32.mrb[0].mxu0
    %v269 = vadd.f32 %v229, %v268
    %v270 = vpop.f32.mrb[0].mxu0
    %v271 = vpop.f32.mrb[0].mxu0
    %v272 = vadd.f32 %v229, %v271
    %v273 = vpop.f32.mrb[0].mxu0
    %274 = vdwg.mxu0
    %v275 = vld [vmem:[#allocation13] sm:$0x1]
    %v277 = vlaneseq
    %v278 = vshrl.u32 %v277, 7
    %v279 = vsub.s32 0, %v278
    %v280 = vrot.slane %v275, %v279
    %v283 = vsel %vm179, %v147, 0
    %285 = vmatprep.subr.bf16.mxu0 0
    %286 = vmatpush1.bf16.msra.mxu0 %v164
    %287 = vmatprep.subr.bf16.mxu0 0
    %288 = vmatpush1.bf16.msra.mxu0 %v165
    %289 = vmatprep.subr.bf16.mxu0 0
    %290 = vmatpush1.bf16.msra.mxu0 0
    %291 = vmatprep.subr.bf16.mxu0 0
    %292 = vmatpush1.bf16.msra.mxu0 0
    %293 = vmatprep.subr.bf16.mxu0 0
    %294 = vmatpush1.bf16.msra.mxu0 0
    %295 = vmatprep.subr.bf16.mxu0 0
    %296 = vmatpush1.bf16.msra.mxu0 0
    %297 = vmatprep.subr.bf16.mxu0 0
    %298 = vmatpush1.bf16.msra.mxu0 0
    %299 = vmatprep.subr.bf16.mxu0 0
    %300 = vmatpush1.bf16.msra.mxu0 0
    %301 = vmatprep.subr.bf16.mxu0 0
    %302 = vmatpush1.bf16.msra.mxu0 0
    %303 = vmatprep.subr.bf16.mxu0 0
    %304 = vmatpush1.bf16.msra.mxu0 0
    %305 = vmatprep.subr.bf16.mxu0 0
    %306 = vmatpush1.bf16.msra.mxu0 0
    %307 = vmatprep.subr.bf16.mxu0 0
    %308 = vmatpush1.bf16.msra.mxu0 0
    %309 = vmatprep.subr.bf16.mxu0 0
    %310 = vmatpush1.bf16.msra.mxu0 0
    %311 = vmatprep.subr.bf16.mxu0 0
    %312 = vmatpush1.bf16.msra.mxu0 0
    %313 = vmatprep.subr.bf16.mxu0 0
    %314 = vmatpush1.bf16.msra.mxu0 0
    %315 = vmatprep.subr.bf16.mxu0 0
    %316 = vmatpush1.bf16.msra.mxu0 0
    %317 = vmatprep.mubr.bf16.mxu0 0
    %318 = vmatmul.mubr.bf16.gmra.mrb[0].mxu0 %v283
    %v319 = vpop.f32.mrb[0].mxu0
    %v320 = vadd.f32 %v280, %v319
    %v321 = vpop.f32.mrb[0].mxu0
    %v322 = vpop.f32.mrb[0].mxu0
    %v323 = vadd.f32 %v280, %v322
    %v324 = vpop.f32.mrb[0].mxu0
    %325 = vdwg.mxu0
    %v326 = vpack.c.bf16 %v218, %v218
    %v327 = vpack.c.bf16 %v221, %v221
    %v328 = vpack.c.bf16 %v269, %v269
    %v329 = vpack.c.bf16 %v272, %v272
    %v330 = vpack.c.bf16 %v320, %v320
    %v331 = vpack.c.bf16 %v323, %v323
    %vm332 = vcmask 64512
    %v334 = vsel %vm332, %v326, 0
    %v337 = vsel %vm332, %v328, 0
    %339 = vmatprep.subr.bf16.mxu0 0
    %340 = vmatpush1.bf16.xpose.msra.mxu0 %v337
    %341 = vmatprep.subr.bf16.mxu0 0
    %342 = vmatpush1.bf16.xpose.msra.mxu0 0
    %343 = vmatprep.subr.bf16.mxu0 0
    %344 = vmatpush1.bf16.xpose.msra.mxu0 0
    %345 = vmatprep.subr.bf16.mxu0 0
    %346 = vmatpush1.bf16.xpose.msra.mxu0 0
    %347 = vmatprep.subr.bf16.mxu0 0
    %348 = vmatpush1.bf16.xpose.msra.mxu0 0
    %349 = vmatprep.subr.bf16.mxu0 0
    %350 = vmatpush1.bf16.xpose.msra.mxu0 0
    %351 = vmatprep.subr.bf16.mxu0 0
    %352 = vmatpush1.bf16.xpose.msra.mxu0 0
    %353 = vmatprep.subr.bf16.mxu0 0
    %354 = vmatpush1.bf16.xpose.msra.mxu0 0
    %355 = vmatprep.subr.bf16.mxu0 0
    %356 = vmatpush1.bf16.xpose.msra.mxu0 0
    %357 = vmatprep.subr.bf16.mxu0 0
    %358 = vmatpush1.bf16.xpose.msra.mxu0 0
    %359 = vmatprep.subr.bf16.mxu0 0
    %360 = vmatpush1.bf16.xpose.msra.mxu0 0
    %361 = vmatprep.subr.bf16.mxu0 0
    %362 = vmatpush1.bf16.xpose.msra.mxu0 0
    %363 = vmatprep.subr.bf16.mxu0 0
    %364 = vmatpush1.bf16.xpose.msra.mxu0 0
    %365 = vmatprep.subr.bf16.mxu0 0
    %366 = vmatpush1.bf16.xpose.msra.mxu0 0
    %367 = vmatprep.subr.bf16.mxu0 0
    %368 = vmatpush1.bf16.xpose.msra.mxu0 0
    %369 = vmatprep.subr.bf16.mxu0 0
    %370 = vmatpush1.bf16.xpose.msra.mxu0 0
    %371 = vmatprep.mubr.bf16.mxu0 0
    %372 = vmatmul.mubr.bf16.gmra.mrb[0].mxu0 %v334
    %v373 = vpop.f32.mrb[0].mxu0
    %v374 = vadd.f32 0.0, %v373
    %v375 = vpop.f32.mrb[0].mxu0
    %v376 = vpop.f32.mrb[0].mxu0
    %v377 = vpop.f32.mrb[0].mxu0
    %378 = vdwg.mxu0
    %v380 = vsel %vm332, %v327, 0
    %v383 = vsel %vm332, %v329, 0
    %385 = vmatprep.subr.bf16.mxu0 0
    %386 = vmatpush1.bf16.xpose.msra.mxu0 %v383
    %387 = vmatprep.subr.bf16.mxu0 0
    %388 = vmatpush1.bf16.xpose.msra.mxu0 0
    %389 = vmatprep.subr.bf16.mxu0 0
    %390 = vmatpush1.bf16.xpose.msra.mxu0 0
    %391 = vmatprep.subr.bf16.mxu0 0
    %392 = vmatpush1.bf16.xpose.msra.mxu0 0
    %393 = vmatprep.subr.bf16.mxu0 0
    %394 = vmatpush1.bf16.xpose.msra.mxu0 0
    %395 = vmatprep.subr.bf16.mxu0 0
    %396 = vmatpush1.bf16.xpose.msra.mxu0 0
    %397 = vmatprep.subr.bf16.mxu0 0
    %398 = vmatpush1.bf16.xpose.msra.mxu0 0
    %399 = vmatprep.subr.bf16.mxu0 0
    %400 = vmatpush1.bf16.xpose.msra.mxu0 0
    %401 = vmatprep.subr.bf16.mxu0 0
    %402 = vmatpush1.bf16.xpose.msra.mxu0 0
    %403 = vmatprep.subr.bf16.mxu0 0
    %404 = vmatpush1.bf16.xpose.msra.mxu0 0
    %405 = vmatprep.subr.bf16.mxu0 0
    %406 = vmatpush1.bf16.xpose.msra.mxu0 0
    %407 = vmatprep.subr.bf16.mxu0 0
    %408 = vmatpush1.bf16.xpose.msra.mxu0 0
    %409 = vmatprep.subr.bf16.mxu0 0
    %410 = vmatpush1.bf16.xpose.msra.mxu0 0
    %411 = vmatprep.subr.bf16.mxu0 0
    %412 = vmatpush1.bf16.xpose.msra.mxu0 0
    %413 = vmatprep.subr.bf16.mxu0 0
    %414 = vmatpush1.bf16.xpose.msra.mxu0 0
    %415 = vmatprep.subr.bf16.mxu0 0
    %416 = vmatpush1.bf16.xpose.msra.mxu0 0
    %417 = vmatprep.mubr.bf16.mxu0 0
    %418 = vmatmul.mubr.bf16.gmra.mrb[0].mxu0 %v380
    %v419 = vpop.f32.mrb[0].mxu0
    %v420 = vadd.f32 0.0, %v419
    %v421 = vpop.f32.mrb[0].mxu0
    %v422 = vpop.f32.mrb[0].mxu0
    %v423 = vpop.f32.mrb[0].mxu0
    %424 = vdwg.mxu0
    %v425 = vmul.f32 %v374, 0.35355338
    %v426 = vmul.f32 %v420, 0.35355338
    %v427 = vsel %vm332, %v425, -inf
    %428 = vmax.xlane.f32.xlu0 %v427
    %v429 = vpop.xlane.xlu0 %428
    %v430 = vsel %vm332, %v426, -inf
    %431 = vmax.xlane.f32.xlu0 %v430
    %v432 = vpop.xlane.xlu0 %431
    %v433 = vsub.f32 %v425, %v429
    %v434 = vsub.f32 %v426, %v432
    %v435 = vmul.f32 %v433, 1.442695
    %v436 = vpow.pop %v435
    %v437 = vmul.f32 %v434, 1.442695
    %v438 = vpow.pop %v437
    %v439 = vsel %vm332, %v436, 0.0
    %440 = vadd.xlane.f32.xlu0 %v439
    %v441 = vpop.xlane.xlu0 %440
    %v442 = vsel %vm332, %v438, 0.0
    %443 = vadd.xlane.f32.xlu0 %v442
    %v444 = vpop.xlane.xlu0 %443
    %v445 = vrcp.pop %v441
    %v446 = vrcp.pop %v444
    %v447 = vmul.f32 %v436, %v445
    %v448 = vmul.f32 %v438, %v446
    %v449 = vpack.c.bf16 %v447, %v447
    %v450 = vpack.c.bf16 %v448, %v448
    %v452 = vsel %vm332, %v449, 0
    %vm454 = vcmask 1043456
    %v456 = vsel %vm454, %v330, 0
    %458 = vmatprep.subr.bf16.mxu0 0
    %459 = vmatpush1.bf16.msra.mxu0 %v456
    %460 = vmatprep.subr.bf16.mxu0 0
    %461 = vmatpush1.bf16.msra.mxu0 0
    %462 = vmatprep.subr.bf16.mxu0 0
    %463 = vmatpush1.bf16.msra.mxu0 0
    %464 = vmatprep.subr.bf16.mxu0 0
    %465 = vmatpush1.bf16.msra.mxu0 0
    %466 = vmatprep.subr.bf16.mxu0 0
    %467 = vmatpush1.bf16.msra.mxu0 0
    %468 = vmatprep.subr.bf16.mxu0 0
    %469 = vmatpush1.bf16.msra.mxu0 0
    %470 = vmatprep.subr.bf16.mxu0 0
    %471 = vmatpush1.bf16.msra.mxu0 0
    %472 = vmatprep.subr.bf16.mxu0 0
    %473 = vmatpush1.bf16.msra.mxu0 0
    %474 = vmatprep.subr.bf16.mxu0 0
    %475 = vmatpush1.bf16.msra.mxu0 0
    %476 = vmatprep.subr.bf16.mxu0 0
    %477 = vmatpush1.bf16.msra.mxu0 0
    %478 = vmatprep.subr.bf16.mxu0 0
    %479 = vmatpush1.bf16.msra.mxu0 0
    %480 = vmatprep.subr.bf16.mxu0 0
    %481 = vmatpush1.bf16.msra.mxu0 0
    %482 = vmatprep.subr.bf16.mxu0 0
    %483 = vmatpush1.bf16.msra.mxu0 0
    %484 = vmatprep.subr.bf16.mxu0 0
    %485 = vmatpush1.bf16.msra.mxu0 0
    %486 = vmatprep.subr.bf16.mxu0 0
    %487 = vmatpush1.bf16.msra.mxu0 0
    %488 = vmatprep.subr.bf16.mxu0 0
    %489 = vmatpush1.bf16.msra.mxu0 0
    %490 = vmatprep.mubr.bf16.mxu0 0
    %491 = vmatmul.mubr.bf16.gmra.mrb[0].mxu0 %v452
    %v492 = vpop.f32.mrb[0].mxu0
    %v493 = vadd.f32 0.0, %v492
    %v494 = vpop.f32.mrb[0].mxu0
    %v495 = vpop.f32.mrb[0].mxu0
    %v496 = vpop.f32.mrb[0].mxu0
    %497 = vdwg.mxu0
    %v499 = vsel %vm332, %v450, 0
    %v502 = vsel %vm454, %v331, 0
    %504 = vmatprep.subr.bf16.mxu0 0
    %505 = vmatpush1.bf16.msra.mxu0 %v502
    %506 = vmatprep.subr.bf16.mxu0 0
    %507 = vmatpush1.bf16.msra.mxu0 0
    %508 = vmatprep.subr.bf16.mxu0 0
    %509 = vmatpush1.bf16.msra.mxu0 0
    %510 = vmatprep.subr.bf16.mxu0 0
    %511 = vmatpush1.bf16.msra.mxu0 0
    %512 = vmatprep.subr.bf16.mxu0 0
    %513 = vmatpush1.bf16.msra.mxu0 0
    %514 = vmatprep.subr.bf16.mxu0 0
    %515 = vmatpush1.bf16.msra.mxu0 0
    %516 = vmatprep.subr.bf16.mxu0 0
    %517 = vmatpush1.bf16.msra.mxu0 0
    %518 = vmatprep.subr.bf16.mxu0 0
    %519 = vmatpush1.bf16.msra.mxu0 0
    %520 = vmatprep.subr.bf16.mxu0 0
    %521 = vmatpush1.bf16.msra.mxu0 0
    %522 = vmatprep.subr.bf16.mxu0 0
    %523 = vmatpush1.bf16.msra.mxu0 0
    %524 = vmatprep.subr.bf16.mxu0 0
    %525 = vmatpush1.bf16.msra.mxu0 0
    %526 = vmatprep.subr.bf16.mxu0 0
    %527 = vmatpush1.bf16.msra.mxu0 0
    %528 = vmatprep.subr.bf16.mxu0 0
    %529 = vmatpush1.bf16.msra.mxu0 0
    %530 = vmatprep.subr.bf16.mxu0 0
    %531 = vmatpush1.bf16.msra.mxu0 0
    %532 = vmatprep.subr.bf16.mxu0 0
    %533 = vmatpush1.bf16.msra.mxu0 0
    %534 = vmatprep.subr.bf16.mxu0 0
    %535 = vmatpush1.bf16.msra.mxu0 0
    %536 = vmatprep.mubr.bf16.mxu0 0
    %537 = vmatmul.mubr.bf16.gmra.mrb[0].mxu0 %v499
    %v538 = vpop.f32.mrb[0].mxu0
    %v539 = vadd.f32 0.0, %v538
    %v540 = vpop.f32.mrb[0].mxu0
    %v541 = vpop.f32.mrb[0].mxu0
    %v542 = vpop.f32.mrb[0].mxu0
    %543 = vdwg.mxu0
    %v544 = vpack.c.bf16 %v539, %v493
    %546 = vrot.lane.b32.xlu0 %v326, 120
    %v547 = vpop.permute.xlu0 %546
    %549 = vrot.lane.b32.xlu0 %v328, 120
    %v550 = vpop.permute.xlu0 %549
    %v552 = vsel %vm332, %v547, 0
    %v555 = vsel %vm332, %v550, 0
    %557 = vmatprep.subr.bf16.mxu0 0
    %558 = vmatpush1.bf16.xpose.msra.mxu0 %v555
    %559 = vmatprep.subr.bf16.mxu0 0
    %560 = vmatpush1.bf16.xpose.msra.mxu0 0
    %561 = vmatprep.subr.bf16.mxu0 0
    %562 = vmatpush1.bf16.xpose.msra.mxu0 0
    %563 = vmatprep.subr.bf16.mxu0 0
    %564 = vmatpush1.bf16.xpose.msra.mxu0 0
    %565 = vmatprep.subr.bf16.mxu0 0
    %566 = vmatpush1.bf16.xpose.msra.mxu0 0
    %567 = vmatprep.subr.bf16.mxu0 0
    %568 = vmatpush1.bf16.xpose.msra.mxu0 0
    %569 = vmatprep.subr.bf16.mxu0 0
    %570 = vmatpush1.bf16.xpose.msra.mxu0 0
    %571 = vmatprep.subr.bf16.mxu0 0
    %572 = vmatpush1.bf16.xpose.msra.mxu0 0
    %573 = vmatprep.subr.bf16.mxu0 0
    %574 = vmatpush1.bf16.xpose.msra.mxu0 0
    %575 = vmatprep.subr.bf16.mxu0 0
    %576 = vmatpush1.bf16.xpose.msra.mxu0 0
    %577 = vmatprep.subr.bf16.mxu0 0
    %578 = vmatpush1.bf16.xpose.msra.mxu0 0
    %579 = vmatprep.subr.bf16.mxu0 0
    %580 = vmatpush1.bf16.xpose.msra.mxu0 0
    %581 = vmatprep.subr.bf16.mxu0 0
    %582 = vmatpush1.bf16.xpose.msra.mxu0 0
    %583 = vmatprep.subr.bf16.mxu0 0
    %584 = vmatpush1.bf16.xpose.msra.mxu0 0
    %585 = vmatprep.subr.bf16.mxu0 0
    %586 = vmatpush1.bf16.xpose.msra.mxu0 0
    %587 = vmatprep.subr.bf16.mxu0 0
    %588 = vmatpush1.bf16.xpose.msra.mxu0 0
    %589 = vmatprep.mubr.bf16.mxu0 0
    %590 = vmatmul.mubr.bf16.gmra.mrb[0].mxu0 %v552
    %v591 = vpop.f32.mrb[0].mxu0
    %v592 = vadd.f32 0.0, %v591
    %v593 = vpop.f32.mrb[0].mxu0
    %v594 = vpop.f32.mrb[0].mxu0
    %v595 = vpop.f32.mrb[0].mxu0
    %596 = vdwg.mxu0
    %598 = vrot.lane.b32.xlu0 %v327, 120
    %v599 = vpop.permute.xlu0 %598
    %601 = vrot.lane.b32.xlu0 %v329, 120
    %v602 = vpop.permute.xlu0 %601
    %v604 = vsel %vm332, %v599, 0
    %v607 = vsel %vm332, %v602, 0
    %609 = vmatprep.subr.bf16.mxu0 0
    %610 = vmatpush1.bf16.xpose.msra.mxu0 %v607
    %611 = vmatprep.subr.bf16.mxu0 0
    %612 = vmatpush1.bf16.xpose.msra.mxu0 0
    %613 = vmatprep.subr.bf16.mxu0 0
    %614 = vmatpush1.bf16.xpose.msra.mxu0 0
    %615 = vmatprep.subr.bf16.mxu0 0
    %616 = vmatpush1.bf16.xpose.msra.mxu0 0
    %617 = vmatprep.subr.bf16.mxu0 0
    %618 = vmatpush1.bf16.xpose.msra.mxu0 0
    %619 = vmatprep.subr.bf16.mxu0 0
    %620 = vmatpush1.bf16.xpose.msra.mxu0 0
    %621 = vmatprep.subr.bf16.mxu0 0
    %622 = vmatpush1.bf16.xpose.msra.mxu0 0
    %623 = vmatprep.subr.bf16.mxu0 0
    %624 = vmatpush1.bf16.xpose.msra.mxu0 0
    %625 = vmatprep.subr.bf16.mxu0 0
    %626 = vmatpush1.bf16.xpose.msra.mxu0 0
    %627 = vmatprep.subr.bf16.mxu0 0
    %628 = vmatpush1.bf16.xpose.msra.mxu0 0
    %629 = vmatprep.subr.bf16.mxu0 0
    %630 = vmatpush1.bf16.xpose.msra.mxu0 0
    %631 = vmatprep.subr.bf16.mxu0 0
    %632 = vmatpush1.bf16.xpose.msra.mxu0 0
    %633 = vmatprep.subr.bf16.mxu0 0
    %634 = vmatpush1.bf16.xpose.msra.mxu0 0
    %635 = vmatprep.subr.bf16.mxu0 0
    %636 = vmatpush1.bf16.xpose.msra.mxu0 0
    %637 = vmatprep.subr.bf16.mxu0 0
    %638 = vmatpush1.bf16.xpose.msra.mxu0 0
    %639 = vmatprep.subr.bf16.mxu0 0
    %640 = vmatpush1.bf16.xpose.msra.mxu0 0
    %641 = vmatprep.mubr.bf16.mxu0 0
    %642 = vmatmul.mubr.bf16.gmra.mrb[0].mxu0 %v604
    %v643 = vpop.f32.mrb[0].mxu0
    %v644 = vadd.f32 0.0, %v643
    %v645 = vpop.f32.mrb[0].mxu0
    %v646 = vpop.f32.mrb[0].mxu0
    %v647 = vpop.f32.mrb[0].mxu0
    %648 = vdwg.mxu0
    %v649 = vmul.f32 %v592, 0.35355338
    %v650 = vmul.f32 %v644, 0.35355338
    %v651 = vsel %vm332, %v649, -inf
    %652 = vmax.xlane.f32.xlu0 %v651
    %v653 = vpop.xlane.xlu0 %652
    %v654 = vsel %vm332, %v650, -inf
    %655 = vmax.xlane.f32.xlu0 %v654
    %v656 = vpop.xlane.xlu0 %655
    %v657 = vsub.f32 %v649, %v653
    %v658 = vsub.f32 %v650, %v656
    %v659 = vmul.f32 %v657, 1.442695
    %v660 = vpow.pop %v659
    %v661 = vmul.f32 %v658, 1.442695
    %v662 = vpow.pop %v661
    %v663 = vsel %vm332, %v660, 0.0
    %664 = vadd.xlane.f32.xlu0 %v663
    %v665 = vpop.xlane.xlu0 %664
    %v666 = vsel %vm332, %v662, 0.0
    %667 = vadd.xlane.f32.xlu0 %v666
    %v668 = vpop.xlane.xlu0 %667
    %v669 = vrcp.pop %v665
    %v670 = vrcp.pop %v668
    %v671 = vmul.f32 %v660, %v669
    %v672 = vmul.f32 %v662, %v670
    %v673 = vpack.c.bf16 %v671, %v671
    %v674 = vpack.c.bf16 %v672, %v672
    %676 = vrot.lane.b32.xlu0 %v330, 120
    %v677 = vpop.permute.xlu0 %676
    %v679 = vsel %vm332, %v673, 0
    %v682 = vsel %vm454, %v677, 0
    %684 = vmatprep.subr.bf16.mxu0 0
    %685 = vmatpush1.bf16.msra.mxu0 %v682
    %686 = vmatprep.subr.bf16.mxu0 0
    %687 = vmatpush1.bf16.msra.mxu0 0
    %688 = vmatprep.subr.bf16.mxu0 0
    %689 = vmatpush1.bf16.msra.mxu0 0
    %690 = vmatprep.subr.bf16.mxu0 0
    %691 = vmatpush1.bf16.msra.mxu0 0
    %692 = vmatprep.subr.bf16.mxu0 0
    %693 = vmatpush1.bf16.msra.mxu0 0
    %694 = vmatprep.subr.bf16.mxu0 0
    %695 = vmatpush1.bf16.msra.mxu0 0
    %696 = vmatprep.subr.bf16.mxu0 0
    %697 = vmatpush1.bf16.msra.mxu0 0
    %698 = vmatprep.subr.bf16.mxu0 0
    %699 = vmatpush1.bf16.msra.mxu0 0
    %700 = vmatprep.subr.bf16.mxu0 0
    %701 = vmatpush1.bf16.msra.mxu0 0
    %702 = vmatprep.subr.bf16.mxu0 0
    %703 = vmatpush1.bf16.msra.mxu0 0
    %704 = vmatprep.subr.bf16.mxu0 0
    %705 = vmatpush1.bf16.msra.mxu0 0
    %706 = vmatprep.subr.bf16.mxu0 0
    %707 = vmatpush1.bf16.msra.mxu0 0
    %708 = vmatprep.subr.bf16.mxu0 0
    %709 = vmatpush1.bf16.msra.mxu0 0
    %710 = vmatprep.subr.bf16.mxu0 0
    %711 = vmatpush1.bf16.msra.mxu0 0
    %712 = vmatprep.subr.bf16.mxu0 0
    %713 = vmatpush1.bf16.msra.mxu0 0
    %714 = vmatprep.subr.bf16.mxu0 0
    %715 = vmatpush1.bf16.msra.mxu0 0
    %716 = vmatprep.mubr.bf16.mxu0 0
    %717 = vmatmul.mubr.bf16.gmra.mrb[0].mxu0 %v679
    %v718 = vpop.f32.mrb[0].mxu0
    %v719 = vadd.f32 0.0, %v718
    %v720 = vpop.f32.mrb[0].mxu0
    %v721 = vpop.f32.mrb[0].mxu0
    %v722 = vpop.f32.mrb[0].mxu0
    %723 = vdwg.mxu0
    %725 = vrot.lane.b32.xlu0 %v331, 120
    %v726 = vpop.permute.xlu0 %725
    %v728 = vsel %vm332, %v674, 0
    %v731 = vsel %vm454, %v726, 0
    %733 = vmatprep.subr.bf16.mxu0 0
    %734 = vmatpush1.bf16.msra.mxu0 %v731
    %735 = vmatprep.subr.bf16.mxu0 0
    %736 = vmatpush1.bf16.msra.mxu0 0
    %737 = vmatprep.subr.bf16.mxu0 0
    %738 = vmatpush1.bf16.msra.mxu0 0
    %739 = vmatprep.subr.bf16.mxu0 0
    %740 = vmatpush1.bf16.msra.mxu0 0
    %741 = vmatprep.subr.bf16.mxu0 0
    %742 = vmatpush1.bf16.msra.mxu0 0
    %743 = vmatprep.subr.bf16.mxu0 0
    %744 = vmatpush1.bf16.msra.mxu0 0
    %745 = vmatprep.subr.bf16.mxu0 0
    %746 = vmatpush1.bf16.msra.mxu0 0
    %747 = vmatprep.subr.bf16.mxu0 0
    %748 = vmatpush1.bf16.msra.mxu0 0
    %749 = vmatprep.subr.bf16.mxu0 0
    %750 = vmatpush1.bf16.msra.mxu0 0
    %751 = vmatprep.subr.bf16.mxu0 0
    %752 = vmatpush1.bf16.msra.mxu0 0
    %753 = vmatprep.subr.bf16.mxu0 0
    %754 = vmatpush1.bf16.msra.mxu0 0
    %755 = vmatprep.subr.bf16.mxu0 0
    %756 = vmatpush1.bf16.msra.mxu0 0
    %757 = vmatprep.subr.bf16.mxu0 0
    %758 = vmatpush1.bf16.msra.mxu0 0
    %759 = vmatprep.subr.bf16.mxu0 0
    %760 = vmatpush1.bf16.msra.mxu0 0
    %761 = vmatprep.subr.bf16.mxu0 0
    %762 = vmatpush1.bf16.msra.mxu0 0
    %763 = vmatprep.subr.bf16.mxu0 0
    %764 = vmatpush1.bf16.msra.mxu0 0
    %765 = vmatprep.mubr.bf16.mxu0 0
    %766 = vmatmul.mubr.bf16.gmra.mrb[0].mxu0 %v728
    %v767 = vpop.f32.mrb[0].mxu0
    %v768 = vadd.f32 0.0, %v767
    %v769 = vpop.f32.mrb[0].mxu0
    %v770 = vpop.f32.mrb[0].mxu0
    %v771 = vpop.f32.mrb[0].mxu0
    %772 = vdwg.mxu0
    %v773 = vpack.c.bf16 %v768, %v719
    %v775 = vrot.slane %v170, 4
    %v777 = vsel %vm332, %v773, 0
    %v780 = vsel %vm454, %v775, 0
    %782 = vmatprep.subr.bf16.mxu0 0
    %783 = vmatpush1.bf16.msra.mxu0 %v780
    %784 = vmatprep.subr.bf16.mxu0 0
    %785 = vmatpush1.bf16.msra.mxu0 0
    %786 = vmatprep.subr.bf16.mxu0 0
    %787 = vmatpush1.bf16.msra.mxu0 0
    %788 = vmatprep.subr.bf16.mxu0 0
    %789 = vmatpush1.bf16.msra.mxu0 0
    %790 = vmatprep.subr.bf16.mxu0 0
    %791 = vmatpush1.bf16.msra.mxu0 0
    %792 = vmatprep.subr.bf16.mxu0 0
    %793 = vmatpush1.bf16.msra.mxu0 0
    %794 = vmatprep.subr.bf16.mxu0 0
    %795 = vmatpush1.bf16.msra.mxu0 0
    %796 = vmatprep.subr.bf16.mxu0 0
    %797 = vmatpush1.bf16.msra.mxu0 0
    %798 = vmatprep.subr.bf16.mxu0 0
    %799 = vmatpush1.bf16.msra.mxu0 0
    %800 = vmatprep.subr.bf16.mxu0 0
    %801 = vmatpush1.bf16.msra.mxu0 0
    %802 = vmatprep.subr.bf16.mxu0 0
    %803 = vmatpush1.bf16.msra.mxu0 0
    %804 = vmatprep.subr.bf16.mxu0 0
    %805 = vmatpush1.bf16.msra.mxu0 0
    %806 = vmatprep.subr.bf16.mxu0 0
    %807 = vmatpush1.bf16.msra.mxu0 0
    %808 = vmatprep.subr.bf16.mxu0 0
    %809 = vmatpush1.bf16.msra.mxu0 0
    %810 = vmatprep.subr.bf16.mxu0 0
    %811 = vmatpush1.bf16.msra.mxu0 0
    %812 = vmatprep.subr.bf16.mxu0 0
    %813 = vmatpush1.bf16.msra.mxu0 0
    %814 = vmatprep.mubr.bf16.mxu0 0
    %815 = vmatmul.mubr.bf16.gmra.mrb[0].mxu0 %v777
    %v816 = vpop.f32.mrb[0].mxu0
    %v817 = vadd.f32 0.0, %v816
    %v818 = vpop.f32.mrb[0].mxu0
    %v819 = vpop.f32.mrb[0].mxu0
    %v820 = vadd.f32 0.0, %v819
    %v821 = vpop.f32.mrb[0].mxu0
    %822 = vdwg.mxu0
    %v824 = vsel %vm332, %v544, 0
    %v827 = vsel %vm454, %v170, 0
    %829 = vmatprep.subr.bf16.mxu0 0
    %830 = vmatpush1.bf16.msra.mxu0 %v827
    %831 = vmatprep.subr.bf16.mxu0 0
    %832 = vmatpush1.bf16.msra.mxu0 0
    %833 = vmatprep.subr.bf16.mxu0 0
    %834 = vmatpush1.bf16.msra.mxu0 0
    %835 = vmatprep.subr.bf16.mxu0 0
    %836 = vmatpush1.bf16.msra.mxu0 0
    %837 = vmatprep.subr.bf16.mxu0 0
    %838 = vmatpush1.bf16.msra.mxu0 0
    %839 = vmatprep.subr.bf16.mxu0 0
    %840 = vmatpush1.bf16.msra.mxu0 0
    %841 = vmatprep.subr.bf16.mxu0 0
    %842 = vmatpush1.bf16.msra.mxu0 0
    %843 = vmatprep.subr.bf16.mxu0 0
    %844 = vmatpush1.bf16.msra.mxu0 0
    %845 = vmatprep.subr.bf16.mxu0 0
    %846 = vmatpush1.bf16.msra.mxu0 0
    %847 = vmatprep.subr.bf16.mxu0 0
    %848 = vmatpush1.bf16.msra.mxu0 0
    %849 = vmatprep.subr.bf16.mxu0 0
    %850 = vmatpush1.bf16.msra.mxu0 0
    %851 = vmatprep.subr.bf16.mxu0 0
    %852 = vmatpush1.bf16.msra.mxu0 0
    %853 = vmatprep.subr.bf16.mxu0 0
    %854 = vmatpush1.bf16.msra.mxu0 0
    %855 = vmatprep.subr.bf16.mxu0 0
    %856 = vmatpush1.bf16.msra.mxu0 0
    %857 = vmatprep.subr.bf16.mxu0 0
    %858 = vmatpush1.bf16.msra.mxu0 0
    %859 = vmatprep.subr.bf16.mxu0 0
    %860 = vmatpush1.bf16.msra.mxu0 0
    %861 = vmatprep.mubr.bf16.mxu0 0
    %862 = vmatmul.mubr.bf16.gmra.mrb[0].mxu0 %v824
    %v863 = vpop.f32.mrb[0].mxu0
    %v864 = vadd.f32 %v817, %v863
    %v865 = vpop.f32.mrb[0].mxu0
    %v866 = vpop.f32.mrb[0].mxu0
    %v867 = vadd.f32 %v820, %v866
    %v868 = vpop.f32.mrb[0].mxu0
    %869 = vdwg.mxu0
    %870 = vrot.lane.b32.xlu0 %v326, 112
    %v871 = vpop.permute.xlu0 %870
    %872 = vrot.lane.b32.xlu0 %v328, 112
    %v873 = vpop.permute.xlu0 %872
    %v875 = vsel %vm332, %v871, 0
    %v878 = vsel %vm332, %v873, 0
    %880 = vmatprep.subr.bf16.mxu0 0
    %881 = vmatpush1.bf16.xpose.msra.mxu0 %v878
    %882 = vmatprep.subr.bf16.mxu0 0
    %883 = vmatpush1.bf16.xpose.msra.mxu0 0
    %884 = vmatprep.subr.bf16.mxu0 0
    %885 = vmatpush1.bf16.xpose.msra.mxu0 0
    %886 = vmatprep.subr.bf16.mxu0 0
    %887 = vmatpush1.bf16.xpose.msra.mxu0 0
    %888 = vmatprep.subr.bf16.mxu0 0
    %889 = vmatpush1.bf16.xpose.msra.mxu0 0
    %890 = vmatprep.subr.bf16.mxu0 0
    %891 = vmatpush1.bf16.xpose.msra.mxu0 0
    %892 = vmatprep.subr.bf16.mxu0 0
    %893 = vmatpush1.bf16.xpose.msra.mxu0 0
    %894 = vmatprep.subr.bf16.mxu0 0
    %895 = vmatpush1.bf16.xpose.msra.mxu0 0
    %896 = vmatprep.subr.bf16.mxu0 0
    %897 = vmatpush1.bf16.xpose.msra.mxu0 0
    %898 = vmatprep.subr.bf16.mxu0 0
    %899 = vmatpush1.bf16.xpose.msra.mxu0 0
    %900 = vmatprep.subr.bf16.mxu0 0
    %901 = vmatpush1.bf16.xpose.msra.mxu0 0
    %902 = vmatprep.subr.bf16.mxu0 0
    %903 = vmatpush1.bf16.xpose.msra.mxu0 0
    %904 = vmatprep.subr.bf16.mxu0 0
    %905 = vmatpush1.bf16.xpose.msra.mxu0 0
    %906 = vmatprep.subr.bf16.mxu0 0
    %907 = vmatpush1.bf16.xpose.msra.mxu0 0
    %908 = vmatprep.subr.bf16.mxu0 0
    %909 = vmatpush1.bf16.xpose.msra.mxu0 0
    %910 = vmatprep.subr.bf16.mxu0 0
    %911 = vmatpush1.bf16.xpose.msra.mxu0 0
    %912 = vmatprep.mubr.bf16.mxu0 0
    %913 = vmatmul.mubr.bf16.gmra.mrb[0].mxu0 %v875
    %v914 = vpop.f32.mrb[0].mxu0
    %v915 = vadd.f32 0.0, %v914
    %v916 = vpop.f32.mrb[0].mxu0
    %v917 = vpop.f32.mrb[0].mxu0
    %v918 = vpop.f32.mrb[0].mxu0
    %919 = vdwg.mxu0
    %920 = vrot.lane.b32.xlu0 %v327, 112
    %v921 = vpop.permute.xlu0 %920
    %922 = vrot.lane.b32.xlu0 %v329, 112
    %v923 = vpop.permute.xlu0 %922
    %v925 = vsel %vm332, %v921, 0
    %v928 = vsel %vm332, %v923, 0
    %930 = vmatprep.subr.bf16.mxu0 0
    %931 = vmatpush1.bf16.xpose.msra.mxu0 %v928
    %932 = vmatprep.subr.bf16.mxu0 0
    %933 = vmatpush1.bf16.xpose.msra.mxu0 0
    %934 = vmatprep.subr.bf16.mxu0 0
    %935 = vmatpush1.bf16.xpose.msra.mxu0 0
    %936 = vmatprep.subr.bf16.mxu0 0
    %937 = vmatpush1.bf16.xpose.msra.mxu0 0
    %938 = vmatprep.subr.bf16.mxu0 0
    %939 = vmatpush1.bf16.xpose.msra.mxu0 0
    %940 = vmatprep.subr.bf16.mxu0 0
    %941 = vmatpush1.bf16.xpose.msra.mxu0 0
    %942 = vmatprep.subr.bf16.mxu0 0
    %943 = vmatpush1.bf16.xpose.msra.mxu0 0
    %944 = vmatprep.subr.bf16.mxu0 0
    %945 = vmatpush1.bf16.xpose.msra.mxu0 0
    %946 = vmatprep.subr.bf16.mxu0 0
    %947 = vmatpush1.bf16.xpose.msra.mxu0 0
    %948 = vmatprep.subr.bf16.mxu0 0
    %949 = vmatpush1.bf16.xpose.msra.mxu0 0
    %950 = vmatprep.subr.bf16.mxu0 0
    %951 = vmatpush1.bf16.xpose.msra.mxu0 0
    %952 = vmatprep.subr.bf16.mxu0 0
    %953 = vmatpush1.bf16.xpose.msra.mxu0 0
    %954 = vmatprep.subr.bf16.mxu0 0
    %955 = vmatpush1.bf16.xpose.msra.mxu0 0
    %956 = vmatprep.subr.bf16.mxu0 0
    %957 = vmatpush1.bf16.xpose.msra.mxu0 0
    %958 = vmatprep.subr.bf16.mxu0 0
    %959 = vmatpush1.bf16.xpose.msra.mxu0 0
    %960 = vmatprep.subr.bf16.mxu0 0
    %961 = vmatpush1.bf16.xpose.msra.mxu0 0
    %962 = vmatprep.mubr.bf16.mxu0 0
    %963 = vmatmul.mubr.bf16.gmra.mrb[0].mxu0 %v925
    %v964 = vpop.f32.mrb[0].mxu0
    %v965 = vadd.f32 0.0, %v964
    %v966 = vpop.f32.mrb[0].mxu0
    %v967 = vpop.f32.mrb[0].mxu0
    %v968 = vpop.f32.mrb[0].mxu0
    %969 = vdwg.mxu0
    %v970 = vmul.f32 %v915, 0.35355338
    %v971 = vmul.f32 %v965, 0.35355338
    %v972 = vsel %vm332, %v970, -inf
    %973 = vmax.xlane.f32.xlu0 %v972
    %v974 = vpop.xlane.xlu0 %973
    %v975 = vsel %vm332, %v971, -inf
    %976 = vmax.xlane.f32.xlu0 %v975
    %v977 = vpop.xlane.xlu0 %976
    %v978 = vsub.f32 %v970, %v974
    %v979 = vsub.f32 %v971, %v977
    %v980 = vmul.f32 %v978, 1.442695
    %v981 = vpow.pop %v980
    %v982 = vmul.f32 %v979, 1.442695
    %v983 = vpow.pop %v982
    %v984 = vsel %vm332, %v981, 0.0
    %985 = vadd.xlane.f32.xlu0 %v984
    %v986 = vpop.xlane.xlu0 %985
    %v987 = vsel %vm332, %v983, 0.0
    %988 = vadd.xlane.f32.xlu0 %v987
    %v989 = vpop.xlane.xlu0 %988
    %v990 = vrcp.pop %v986
    %v991 = vrcp.pop %v989
    %v992 = vmul.f32 %v981, %v990
    %v993 = vmul.f32 %v983, %v991
    %v994 = vpack.c.bf16 %v992, %v992
    %v995 = vpack.c.bf16 %v993, %v993
    %996 = vrot.lane.b32.xlu0 %v330, 112
    %v997 = vpop.permute.xlu0 %996
    %v999 = vsel %vm332, %v994, 0
    %v1002 = vsel %vm454, %v997, 0
    %1004 = vmatprep.subr.bf16.mxu0 0
    %1005 = vmatpush1.bf16.msra.mxu0 %v1002
    %1006 = vmatprep.subr.bf16.mxu0 0
    %1007 = vmatpush1.bf16.msra.mxu0 0
    %1008 = vmatprep.subr.bf16.mxu0 0
    %1009 = vmatpush1.bf16.msra.mxu0 0
    %1010 = vmatprep.subr.bf16.mxu0 0
    %1011 = vmatpush1.bf16.msra.mxu0 0
    %1012 = vmatprep.subr.bf16.mxu0 0
    %1013 = vmatpush1.bf16.msra.mxu0 0
    %1014 = vmatprep.subr.bf16.mxu0 0
    %1015 = vmatpush1.bf16.msra.mxu0 0
    %1016 = vmatprep.subr.bf16.mxu0 0
    %1017 = vmatpush1.bf16.msra.mxu0 0
    %1018 = vmatprep.subr.bf16.mxu0 0
    %1019 = vmatpush1.bf16.msra.mxu0 0
    %1020 = vmatprep.subr.bf16.mxu0 0
    %1021 = vmatpush1.bf16.msra.mxu0 0
    %1022 = vmatprep.subr.bf16.mxu0 0
    %1023 = vmatpush1.bf16.msra.mxu0 0
    %1024 = vmatprep.subr.bf16.mxu0 0
    %1025 = vmatpush1.bf16.msra.mxu0 0
    %1026 = vmatprep.subr.bf16.mxu0 0
    %1027 = vmatpush1.bf16.msra.mxu0 0
    %1028 = vmatprep.subr.bf16.mxu0 0
    %1029 = vmatpush1.bf16.msra.mxu0 0
    %1030 = vmatprep.subr.bf16.mxu0 0
    %1031 = vmatpush1.bf16.msra.mxu0 0
    %1032 = vmatprep.subr.bf16.mxu0 0
    %1033 = vmatpush1.bf16.msra.mxu0 0
    %1034 = vmatprep.subr.bf16.mxu0 0
    %1035 = vmatpush1.bf16.msra.mxu0 0
    %1036 = vmatprep.mubr.bf16.mxu0 0
    %1037 = vmatmul.mubr.bf16.gmra.mrb[0].mxu0 %v999
    %v1038 = vpop.f32.mrb[0].mxu0
    %v1039 = vadd.f32 0.0, %v1038
    %v1040 = vpop.f32.mrb[0].mxu0
    %v1041 = vpop.f32.mrb[0].mxu0
    %v1042 = vpop.f32.mrb[0].mxu0
    %1043 = vdwg.mxu0
    %1044 = vrot.lane.b32.xlu0 %v331, 112
    %v1045 = vpop.permute.xlu0 %1044
    %v1047 = vsel %vm332, %v995, 0
    %v1050 = vsel %vm454, %v1045, 0
    %1052 = vmatprep.subr.bf16.mxu0 0
    %1053 = vmatpush1.bf16.msra.mxu0 %v1050
    %1054 = vmatprep.subr.bf16.mxu0 0
    %1055 = vmatpush1.bf16.msra.mxu0 0
    %1056 = vmatprep.subr.bf16.mxu0 0
    %1057 = vmatpush1.bf16.msra.mxu0 0
    %1058 = vmatprep.subr.bf16.mxu0 0
    %1059 = vmatpush1.bf16.msra.mxu0 0
    %1060 = vmatprep.subr.bf16.mxu0 0
    %1061 = vmatpush1.bf16.msra.mxu0 0
    %1062 = vmatprep.subr.bf16.mxu0 0
    %1063 = vmatpush1.bf16.msra.mxu0 0
    %1064 = vmatprep.subr.bf16.mxu0 0
    %1065 = vmatpush1.bf16.msra.mxu0 0
    %1066 = vmatprep.subr.bf16.mxu0 0
    %1067 = vmatpush1.bf16.msra.mxu0 0
    %1068 = vmatprep.subr.bf16.mxu0 0
    %1069 = vmatpush1.bf16.msra.mxu0 0
    %1070 = vmatprep.subr.bf16.mxu0 0
    %1071 = vmatpush1.bf16.msra.mxu0 0
    %1072 = vmatprep.subr.bf16.mxu0 0
    %1073 = vmatpush1.bf16.msra.mxu0 0
    %1074 = vmatprep.subr.bf16.mxu0 0
    %1075 = vmatpush1.bf16.msra.mxu0 0
    %1076 = vmatprep.subr.bf16.mxu0 0
    %1077 = vmatpush1.bf16.msra.mxu0 0
    %1078 = vmatprep.subr.bf16.mxu0 0
    %1079 = vmatpush1.bf16.msra.mxu0 0
    %1080 = vmatprep.subr.bf16.mxu0 0
    %1081 = vmatpush1.bf16.msra.mxu0 0
    %1082 = vmatprep.subr.bf16.mxu0 0
    %1083 = vmatpush1.bf16.msra.mxu0 0
    %1084 = vmatprep.mubr.bf16.mxu0 0
    %1085 = vmatmul.mubr.bf16.gmra.mrb[0].mxu0 %v1047
    %v1086 = vpop.f32.mrb[0].mxu0
    %v1087 = vadd.f32 0.0, %v1086
    %v1088 = vpop.f32.mrb[0].mxu0
    %v1089 = vpop.f32.mrb[0].mxu0
    %v1090 = vpop.f32.mrb[0].mxu0
    %1091 = vdwg.mxu0
    %v1092 = vpack.c.bf16 %v1087, %v1039
    %v1094 = vsel %vm332, %v1092, 0
    %v1097 = vsel %vm454, %v171, 0
    %1099 = vmatprep.subr.bf16.mxu0 0
    %1100 = vmatpush1.bf16.msra.mxu0 %v1097
    %1101 = vmatprep.subr.bf16.mxu0 0
    %1102 = vmatpush1.bf16.msra.mxu0 0
    %1103 = vmatprep.subr.bf16.mxu0 0
    %1104 = vmatpush1.bf16.msra.mxu0 0
    %1105 = vmatprep.subr.bf16.mxu0 0
    %1106 = vmatpush1.bf16.msra.mxu0 0
    %1107 = vmatprep.subr.bf16.mxu0 0
    %1108 = vmatpush1.bf16.msra.mxu0 0
    %1109 = vmatprep.subr.bf16.mxu0 0
    %1110 = vmatpush1.bf16.msra.mxu0 0
    %1111 = vmatprep.subr.bf16.mxu0 0
    %1112 = vmatpush1.bf16.msra.mxu0 0
    %1113 = vmatprep.subr.bf16.mxu0 0
    %1114 = vmatpush1.bf16.msra.mxu0 0
    %1115 = vmatprep.subr.bf16.mxu0 0
    %1116 = vmatpush1.bf16.msra.mxu0 0
    %1117 = vmatprep.subr.bf16.mxu0 0
    %1118 = vmatpush1.bf16.msra.mxu0 0
    %1119 = vmatprep.subr.bf16.mxu0 0
    %1120 = vmatpush1.bf16.msra.mxu0 0
    %1121 = vmatprep.subr.bf16.mxu0 0
    %1122 = vmatpush1.bf16.msra.mxu0 0
    %1123 = vmatprep.subr.bf16.mxu0 0
    %1124 = vmatpush1.bf16.msra.mxu0 0
    %1125 = vmatprep.subr.bf16.mxu0 0
    %1126 = vmatpush1.bf16.msra.mxu0 0
    %1127 = vmatprep.subr.bf16.mxu0 0
    %1128 = vmatpush1.bf16.msra.mxu0 0
    %1129 = vmatprep.subr.bf16.mxu0 0
    %1130 = vmatpush1.bf16.msra.mxu0 0
    %1131 = vmatprep.mubr.bf16.mxu0 0
    %1132 = vmatmul.mubr.bf16.gmra.mrb[0].mxu0 %v1094
    %v1133 = vpop.f32.mrb[0].mxu0
    %v1134 = vadd.f32 0.0, %v1133
    %v1135 = vpop.f32.mrb[0].mxu0
    %v1136 = vpop.f32.mrb[0].mxu0
    %v1137 = vadd.f32 0.0, %v1136
    %v1138 = vpop.f32.mrb[0].mxu0
    %1139 = vdwg.mxu0
    %v1140 = vadd.f32 %v864, %v1134
    %v1141 = vadd.f32 %v867, %v1137
    %1142 = vrot.lane.b32.xlu0 %v326, 104
    %v1143 = vpop.permute.xlu0 %1142
    %1144 = vrot.lane.b32.xlu0 %v328, 104
    %v1145 = vpop.permute.xlu0 %1144
    %v1147 = vsel %vm332, %v1143, 0
    %v1150 = vsel %vm332, %v1145, 0
    %1152 = vmatprep.subr.bf16.mxu0 0
    %1153 = vmatpush1.bf16.xpose.msra.mxu0 %v1150
    %1154 = vmatprep.subr.bf16.mxu0 0
    %1155 = vmatpush1.bf16.xpose.msra.mxu0 0
    %1156 = vmatprep.subr.bf16.mxu0 0
    %1157 = vmatpush1.bf16.xpose.msra.mxu0 0
    %1158 = vmatprep.subr.bf16.mxu0 0
    %1159 = vmatpush1.bf16.xpose.msra.mxu0 0
    %1160 = vmatprep.subr.bf16.mxu0 0
    %1161 = vmatpush1.bf16.xpose.msra.mxu0 0
    %1162 = vmatprep.subr.bf16.mxu0 0
    %1163 = vmatpush1.bf16.xpose.msra.mxu0 0
    %1164 = vmatprep.subr.bf16.mxu0 0
    %1165 = vmatpush1.bf16.xpose.msra.mxu0 0
    %1166 = vmatprep.subr.bf16.mxu0 0
    %1167 = vmatpush1.bf16.xpose.msra.mxu0 0
    %1168 = vmatprep.subr.bf16.mxu0 0
    %1169 = vmatpush1.bf16.xpose.msra.mxu0 0
    %1170 = vmatprep.subr.bf16.mxu0 0
    %1171 = vmatpush1.bf16.xpose.msra.mxu0 0
    %1172 = vmatprep.subr.bf16.mxu0 0
    %1173 = vmatpush1.bf16.xpose.msra.mxu0 0
    %1174 = vmatprep.subr.bf16.mxu0 0
    %1175 = vmatpush1.bf16.xpose.msra.mxu0 0
    %1176 = vmatprep.subr.bf16.mxu0 0
    %1177 = vmatpush1.bf16.xpose.msra.mxu0 0
    %1178 = vmatprep.subr.bf16.mxu0 0
    %1179 = vmatpush1.bf16.xpose.msra.mxu0 0
    %1180 = vmatprep.subr.bf16.mxu0 0
    %1181 = vmatpush1.bf16.xpose.msra.mxu0 0
    %1182 = vmatprep.subr.bf16.mxu0 0
    %1183 = vmatpush1.bf16.xpose.msra.mxu0 0
    %1184 = vmatprep.mubr.bf16.mxu0 0
    %1185 = vmatmul.mubr.bf16.gmra.mrb[0].mxu0 %v1147
    %v1186 = vpop.f32.mrb[0].mxu0
    %v1187 = vadd.f32 0.0, %v1186
    %v1188 = vpop.f32.mrb[0].mxu0
    %v1189 = vpop.f32.mrb[0].mxu0
    %v1190 = vpop.f32.mrb[0].mxu0
    %1191 = vdwg.mxu0
    %1192 = vrot.lane.b32.xlu0 %v327, 104
    %v1193 = vpop.permute.xlu0 %1192
    %1194 = vrot.lane.b32.xlu0 %v329, 104
    %v1195 = vpop.permute.xlu0 %1194
    %v1197 = vsel %vm332, %v1193, 0
    %v1200 = vsel %vm332, %v1195, 0
    %1202 = vmatprep.subr.bf16.mxu0 0
    %1203 = vmatpush1.bf16.xpose.msra.mxu0 %v1200
    %1204 = vmatprep.subr.bf16.mxu0 0
    %1205 = vmatpush1.bf16.xpose.msra.mxu0 0
    %1206 = vmatprep.subr.bf16.mxu0 0
    %1207 = vmatpush1.bf16.xpose.msra.mxu0 0
    %1208 = vmatprep.subr.bf16.mxu0 0
    %1209 = vmatpush1.bf16.xpose.msra.mxu0 0
    %1210 = vmatprep.subr.bf16.mxu0 0
    %1211 = vmatpush1.bf16.xpose.msra.mxu0 0
    %1212 = vmatprep.subr.bf16.mxu0 0
    %1213 = vmatpush1.bf16.xpose.msra.mxu0 0
    %1214 = vmatprep.subr.bf16.mxu0 0
    %1215 = vmatpush1.bf16.xpose.msra.mxu0 0
    %1216 = vmatprep.subr.bf16.mxu0 0
    %1217 = vmatpush1.bf16.xpose.msra.mxu0 0
    %1218 = vmatprep.subr.bf16.mxu0 0
    %1219 = vmatpush1.bf16.xpose.msra.mxu0 0
    %1220 = vmatprep.subr.bf16.mxu0 0
    %1221 = vmatpush1.bf16.xpose.msra.mxu0 0
    %1222 = vmatprep.subr.bf16.mxu0 0
    %1223 = vmatpush1.bf16.xpose.msra.mxu0 0
    %1224 = vmatprep.subr.bf16.mxu0 0
    %1225 = vmatpush1.bf16.xpose.msra.mxu0 0
    %1226 = vmatprep.subr.bf16.mxu0 0
    %1227 = vmatpush1.bf16.xpose.msra.mxu0 0
    %1228 = vmatprep.subr.bf16.mxu0 0
    %1229 = vmatpush1.bf16.xpose.msra.mxu0 0
    %1230 = vmatprep.subr.bf16.mxu0 0
    %1231 = vmatpush1.bf16.xpose.msra.mxu0 0
    %1232 = vmatprep.subr.bf16.mxu0 0
    %1233 = vmatpush1.bf16.xpose.msra.mxu0 0
    %1234 = vmatprep.mubr.bf16.mxu0 0
    %1235 = vmatmul.mubr.bf16.gmra.mrb[0].mxu0 %v1197
    %v1236 = vpop.f32.mrb[0].mxu0
    %v1237 = vadd.f32 0.0, %v1236
    %v1238 = vpop.f32.mrb[0].mxu0
    %v1239 = vpop.f32.mrb[0].mxu0
    %v1240 = vpop.f32.mrb[0].mxu0
    %1241 = vdwg.mxu0
    %v1242 = vmul.f32 %v1187, 0.35355338
    %v1243 = vmul.f32 %v1237, 0.35355338
    %v1244 = vsel %vm332, %v1242, -inf
    %1245 = vmax.xlane.f32.xlu0 %v1244
    %v1246 = vpop.xlane.xlu0 %1245
    %v1247 = vsel %vm332, %v1243, -inf
    %1248 = vmax.xlane.f32.xlu0 %v1247
    %v1249 = vpop.xlane.xlu0 %1248
    %v1250 = vsub.f32 %v1242, %v1246
    %v1251 = vsub.f32 %v1243, %v1249
    %v1252 = vmul.f32 %v1250, 1.442695
    %v1253 = vpow.pop %v1252
    %v1254 = vmul.f32 %v1251, 1.442695
    %v1255 = vpow.pop %v1254
    %v1256 = vsel %vm332, %v1253, 0.0
    %1257 = vadd.xlane.f32.xlu0 %v1256
    %v1258 = vpop.xlane.xlu0 %1257
    %v1259 = vsel %vm332, %v1255, 0.0
    %1260 = vadd.xlane.f32.xlu0 %v1259
    %v1261 = vpop.xlane.xlu0 %1260
    %v1262 = vrcp.pop %v1258
    %v1263 = vrcp.pop %v1261
    %v1264 = vmul.f32 %v1253, %v1262
    %v1265 = vmul.f32 %v1255, %v1263
    %v1266 = vpack.c.bf16 %v1264, %v1264
    %v1267 = vpack.c.bf16 %v1265, %v1265
    %1268 = vrot.lane.b32.xlu0 %v330, 104
    %v1269 = vpop.permute.xlu0 %1268
    %v1271 = vsel %vm332, %v1266, 0
    %v1274 = vsel %vm454, %v1269, 0
    %1276 = vmatprep.subr.bf16.mxu0 0
    %1277 = vmatpush1.bf16.msra.mxu0 %v1274
    %1278 = vmatprep.subr.bf16.mxu0 0
    %1279 = vmatpush1.bf16.msra.mxu0 0
    %1280 = vmatprep.subr.bf16.mxu0 0
    %1281 = vmatpush1.bf16.msra.mxu0 0
    %1282 = vmatprep.subr.bf16.mxu0 0
    %1283 = vmatpush1.bf16.msra.mxu0 0
    %1284 = vmatprep.subr.bf16.mxu0 0
    %1285 = vmatpush1.bf16.msra.mxu0 0
    %1286 = vmatprep.subr.bf16.mxu0 0
    %1287 = vmatpush1.bf16.msra.mxu0 0
    %1288 = vmatprep.subr.bf16.mxu0 0
    %1289 = vmatpush1.bf16.msra.mxu0 0
    %1290 = vmatprep.subr.bf16.mxu0 0
    %1291 = vmatpush1.bf16.msra.mxu0 0
    %1292 = vmatprep.subr.bf16.mxu0 0
    %1293 = vmatpush1.bf16.msra.mxu0 0
    %1294 = vmatprep.subr.bf16.mxu0 0
    %1295 = vmatpush1.bf16.msra.mxu0 0
    %1296 = vmatprep.subr.bf16.mxu0 0
    %1297 = vmatpush1.bf16.msra.mxu0 0
    %1298 = vmatprep.subr.bf16.mxu0 0
    %1299 = vmatpush1.bf16.msra.mxu0 0
    %1300 = vmatprep.subr.bf16.mxu0 0
    %1301 = vmatpush1.bf16.msra.mxu0 0
    %1302 = vmatprep.subr.bf16.mxu0 0
    %1303 = vmatpush1.bf16.msra.mxu0 0
    %1304 = vmatprep.subr.bf16.mxu0 0
    %1305 = vmatpush1.bf16.msra.mxu0 0
    %1306 = vmatprep.subr.bf16.mxu0 0
    %1307 = vmatpush1.bf16.msra.mxu0 0
    %1308 = vmatprep.mubr.bf16.mxu0 0
    %1309 = vmatmul.mubr.bf16.gmra.mrb[0].mxu0 %v1271
    %v1310 = vpop.f32.mrb[0].mxu0
    %v1311 = vadd.f32 0.0, %v1310
    %v1312 = vpop.f32.mrb[0].mxu0
    %v1313 = vpop.f32.mrb[0].mxu0
    %v1314 = vpop.f32.mrb[0].mxu0
    %1315 = vdwg.mxu0
    %1316 = vrot.lane.b32.xlu0 %v331, 104
    %v1317 = vpop.permute.xlu0 %1316
    %v1319 = vsel %vm332, %v1267, 0
    %v1322 = vsel %vm454, %v1317, 0
    %1324 = vmatprep.subr.bf16.mxu0 0
    %1325 = vmatpush1.bf16.msra.mxu0 %v1322
    %1326 = vmatprep.subr.bf16.mxu0 0
    %1327 = vmatpush1.bf16.msra.mxu0 0
    %1328 = vmatprep.subr.bf16.mxu0 0
    %1329 = vmatpush1.bf16.msra.mxu0 0
    %1330 = vmatprep.subr.bf16.mxu0 0
    %1331 = vmatpush1.bf16.msra.mxu0 0
    %1332 = vmatprep.subr.bf16.mxu0 0
    %1333 = vmatpush1.bf16.msra.mxu0 0
    %1334 = vmatprep.subr.bf16.mxu0 0
    %1335 = vmatpush1.bf16.msra.mxu0 0
    %1336 = vmatprep.subr.bf16.mxu0 0
    %1337 = vmatpush1.bf16.msra.mxu0 0
    %1338 = vmatprep.subr.bf16.mxu0 0
    %1339 = vmatpush1.bf16.msra.mxu0 0
    %1340 = vmatprep.subr.bf16.mxu0 0
    %1341 = vmatpush1.bf16.msra.mxu0 0
    %1342 = vmatprep.subr.bf16.mxu0 0
    %1343 = vmatpush1.bf16.msra.mxu0 0
    %1344 = vmatprep.subr.bf16.mxu0 0
    %1345 = vmatpush1.bf16.msra.mxu0 0
    %1346 = vmatprep.subr.bf16.mxu0 0
    %1347 = vmatpush1.bf16.msra.mxu0 0
    %1348 = vmatprep.subr.bf16.mxu0 0
    %1349 = vmatpush1.bf16.msra.mxu0 0
    %1350 = vmatprep.subr.bf16.mxu0 0
    %1351 = vmatpush1.bf16.msra.mxu0 0
    %1352 = vmatprep.subr.bf16.mxu0 0
    %1353 = vmatpush1.bf16.msra.mxu0 0
    %1354 = vmatprep.subr.bf16.mxu0 0
    %1355 = vmatpush1.bf16.msra.mxu0 0
    %1356 = vmatprep.mubr.bf16.mxu0 0
    %1357 = vmatmul.mubr.bf16.gmra.mrb[0].mxu0 %v1319
    %v1358 = vpop.f32.mrb[0].mxu0
    %v1359 = vadd.f32 0.0, %v1358
    %v1360 = vpop.f32.mrb[0].mxu0
    %v1361 = vpop.f32.mrb[0].mxu0
    %v1362 = vpop.f32.mrb[0].mxu0
    %1363 = vdwg.mxu0
    %v1364 = vpack.c.bf16 %v1359, %v1311
    %v1366 = vrot.slane %v171, 4
    %v1368 = vsel %vm332, %v1364, 0
    %v1371 = vsel %vm454, %v1366, 0
    %1373 = vmatprep.subr.bf16.mxu0 0
    %1374 = vmatpush1.bf16.msra.mxu0 %v1371
    %1375 = vmatprep.subr.bf16.mxu0 0
    %1376 = vmatpush1.bf16.msra.mxu0 0
    %1377 = vmatprep.subr.bf16.mxu0 0
    %1378 = vmatpush1.bf16.msra.mxu0 0
    %1379 = vmatprep.subr.bf16.mxu0 0
    %1380 = vmatpush1.bf16.msra.mxu0 0
    %1381 = vmatprep.subr.bf16.mxu0 0
    %1382 = vmatpush1.bf16.msra.mxu0 0
    %1383 = vmatprep.subr.bf16.mxu0 0
    %1384 = vmatpush1.bf16.msra.mxu0 0
    %1385 = vmatprep.subr.bf16.mxu0 0
    %1386 = vmatpush1.bf16.msra.mxu0 0
    %1387 = vmatprep.subr.bf16.mxu0 0
    %1388 = vmatpush1.bf16.msra.mxu0 0
    %1389 = vmatprep.subr.bf16.mxu0 0
    %1390 = vmatpush1.bf16.msra.mxu0 0
    %1391 = vmatprep.subr.bf16.mxu0 0
    %1392 = vmatpush1.bf16.msra.mxu0 0
    %1393 = vmatprep.subr.bf16.mxu0 0
    %1394 = vmatpush1.bf16.msra.mxu0 0
    %1395 = vmatprep.subr.bf16.mxu0 0
    %1396 = vmatpush1.bf16.msra.mxu0 0
    %1397 = vmatprep.subr.bf16.mxu0 0
    %1398 = vmatpush1.bf16.msra.mxu0 0
    %1399 = vmatprep.subr.bf16.mxu0 0
    %1400 = vmatpush1.bf16.msra.mxu0 0
    %1401 = vmatprep.subr.bf16.mxu0 0
    %1402 = vmatpush1.bf16.msra.mxu0 0
    %1403 = vmatprep.subr.bf16.mxu0 0
    %1404 = vmatpush1.bf16.msra.mxu0 0
    %1405 = vmatprep.mubr.bf16.mxu0 0
    %1406 = vmatmul.mubr.bf16.gmra.mrb[0].mxu0 %v1368
    %v1407 = vpop.f32.mrb[0].mxu0
    %v1408 = vadd.f32 0.0, %v1407
    %v1409 = vpop.f32.mrb[0].mxu0
    %v1410 = vpop.f32.mrb[0].mxu0
    %v1411 = vadd.f32 0.0, %v1410
    %v1412 = vpop.f32.mrb[0].mxu0
    %1413 = vdwg.mxu0
    %v1414 = vadd.f32 %v1140, %v1408
    %v1415 = vadd.f32 %v1141, %v1411
    %v1416 = vld [vmem:[%s10] sm:$0x1]
    %v1418 = vlaneseq
    %v1419 = vshrl.u32 %v1418, 7
    %v1420 = vsub.s32 0, %v1419
    %v1421 = vrot.slane %v1416, %v1420
    %v1423 = vadd.f32 %v1414, %v1421
    %v1424 = vadd.f32 %v1415, %v1421
    %v1425 = vadd.f32 %v139, %v1423
    %v1426 = vadd.f32 %v140, %v1424
    %v1427 = vsel %vm179, %v1425, 0.0
    %1428 = vadd.xlane.f32.xlu0 %v1427
    %v1429 = vpop.xlane.xlu0 %1428
    %v1430 = vsel %vm179, %v1426, 0.0
    %1431 = vadd.xlane.f32.xlu0 %v1430
    %v1432 = vpop.xlane.xlu0 %1431
    %v1433 = vrcp.pop 32.0
    %v1434 = vmul.f32 %v1429, %v1433
    %v1435 = vmul.f32 %v1432, %v1433
    %v1436 = vsub.f32 %v1425, %v1434
    %v1437 = vsub.f32 %v1426, %v1435
    %v1438 = vmul.f32 %v1436, %v1436
    %v1439 = vmul.f32 %v1437, %v1437
    %v1440 = vsel %vm179, %v1438, 0.0
    %1441 = vadd.xlane.f32.xlu0 %v1440
    %v1442 = vpop.xlane.xlu0 %1441
    %v1443 = vsel %vm179, %v1439, 0.0
    %1444 = vadd.xlane.f32.xlu0 %v1443
    %v1445 = vpop.xlane.xlu0 %1444
    %v1446 = vmul.f32 %v1442, %v1433
    %v1447 = vmul.f32 %v1445, %v1433
    %v1448 = vadd.f32 %v1446, 1e-05
    %v1449 = vadd.f32 %v1447, 1e-05
    %v1450 = vrsqrt.pop %v1448
    %v1451 = vrsqrt.pop %v1449
    %v1452 = vmul.f32 %v1436, %v1450
    %v1453 = vmul.f32 %v1437, %v1451
    %v1454 = vld [vmem:[%s11] sm:$0x1]
    %v1456 = vlaneseq
    %v1457 = vshrl.u32 %v1456, 7
    %v1458 = vsub.s32 0, %v1457
    %v1459 = vrot.slane %v1454, %v1458
    %v1461 = vmul.f32 %v1452, %v1459
    %v1462 = vmul.f32 %v1453, %v1459
    %v1463 = vld [vmem:[%s12] sm:$0x1]
    %v1465 = vlaneseq
    %v1466 = vshrl.u32 %v1465, 7
    %v1467 = vsub.s32 0, %v1466
    %v1468 = vrot.slane %v1463, %v1467
    %v1470 = vadd.f32 %v1461, %v1468
    %v1471 = vadd.f32 %v1462, %v1468
    %1472 = vst.msk [vmem:[#allocation14] sm:$0xff] %vm179, %v1470
    %1473 = vst.msk [vmem:[#allocation14 + $0x8] sm:$0xff] %vm179, %v1471
    // Predicated region
    $region82: #{tpu_custom_call.1} parent=1 // pred_check
      _
    $region83: #{tpu_custom_call.1} parent=1 // pred_check_branch
      %1475 = sbr.rel (0) target = $region85
    $region84: #{tpu_custom_call.1} parent=1 // pred_region
      %s1477 = ssub.s32 256, 256
      %1478 = vsyncadd [#allocation4], %s1477
      %s1479 = sshll.u32 [#allocation14], 4
      %s1480 = int_to_ptr.vmem [resolvable:$true] %s1479
      %1485 = dma.vmem_to_hbm [thread:$0]  %s1480, 256, %s13, [#allocation4], 128, 128, 8
    $region85: #{tpu_custom_call.1} parent=1 // pred_fallthru
      _
    // Predicated region
    $region86: #{tpu_custom_call.1} parent=1 // pred_check
      _
    $region87: #{tpu_custom_call.1} parent=1 // pred_check_branch
      %1487 = sbr.rel (0) target = $region89
    $region88: #{tpu_custom_call.1} parent=1 // pred_region
      %1488 = dma.done [#allocation4], 256
    $region89: #{tpu_custom_call.1} parent=1 // pred_fallthru
      _
    %1489 = vsyncpa [#allocation3], 1
    %1490 = vsyncpa [#allocation6], 1
    %1491 = vsyncpa [#allocation9], 1
    %1492 = vsyncpa [#allocation12], 1
    %1493 = vsyncpa [#allocation4], 1

</llo_original>
